<compile_context>
chip_gen: v7x
topology: tpu7x:2x2x1
jax: 0.10.0
libtpu: 0.0.40
codegen_flags: <defaults>
</compile_context>

<pallas_src>
import functools

import jax
import jax.numpy as jnp
from jax import lax
from jax.experimental import pallas as pl
from jax.experimental.pallas import tpu as pltpu

EXPANSION = 4
EPS = 1e-5


def bottleneck1d_kernel(x_ref, halo_ref, w1_ref, b1_ref, w2_ref, b2_ref,
                        w3_ref, b3_ref, o_ref, *, fuse_taps):
    x = x_ref[...]                    # (Cin, TL) bf16: channels on sublanes, length on lanes
    halo = halo_ref[...]              # (Cin, 2)  bf16: col0 = x[l0-1], col1 = x[l0+TL]
    cdt = x.dtype                     # streaming / matmul operand dtype

    w1 = w1_ref[...]                  # (P, Cin) bf16, BN1 scale folded in
    b1 = b1_ref[...]                  # (P, 1)   f32

    # --- conv1 (1x1) + bn1 shift + relu (f32 accumulation) -------------------
    h1 = jnp.maximum(jnp.dot(w1, x, preferred_element_type=jnp.float32) + b1, 0.0)

    # Same transform on the halo columns. conv2 zero-pads its *input* (the
    # post-bn1 activations), so at true sequence ends the contribution must be
    # exactly zero, not relu(b1).
    t = pl.program_id(1)
    n_t = pl.num_programs(1)
    h1_halo = jnp.maximum(
        jnp.dot(w1, halo, preferred_element_type=jnp.float32) + b1, 0.0)        # (P, 2)
    h1_prev = jnp.where(t == 0, 0.0, h1_halo[:, 0:1])                           # (P, 1)
    h1_next = jnp.where(t == n_t - 1, 0.0, h1_halo[:, 1:2])                     # (P, 1)

    # --- conv2 (k=3, pad=1, stride=1) + bn2 shift + relu ----------------------
    tl = h1.shape[1]
    col = lax.broadcasted_iota(jnp.int32, h1.shape, 1)
    h1_m1 = jnp.where(col == 0, h1_prev, pltpu.roll(h1, shift=1, axis=1))            # h1[l-1]
    h1_p1 = jnp.where(col == tl - 1, h1_next, pltpu.roll(h1, shift=tl - 1, axis=1))  # h1[l+1]

    b2 = b2_ref[...]
    if fuse_taps:
        # Small P: one (P, 3P) @ (3P, TL) MXU op.
        h_cat = jnp.concatenate([h1_m1, h1, h1_p1], axis=0).astype(cdt)         # (3P, TL)
        h2 = jnp.dot(w2_ref[...], h_cat, preferred_element_type=jnp.float32) + b2
    else:
        # Large P: three accumulating K=P dots, no (3P, TL) concat buffer.
        h2 = (jnp.dot(w2_ref[0], h1_m1.astype(cdt), preferred_element_type=jnp.float32)
              + jnp.dot(w2_ref[1], h1.astype(cdt), preferred_element_type=jnp.float32)
              + jnp.dot(w2_ref[2], h1_p1.astype(cdt), preferred_element_type=jnp.float32)
              + b2)
    h2 = jnp.maximum(h2, 0.0)

    # --- conv3 (1x1) + bn3 shift + residual + relu ----------------------------
    h3 = (jnp.dot(w3_ref[...], h2.astype(cdt), preferred_element_type=jnp.float32)
          + b3_ref[...])
    o_ref[...] = jnp.maximum(h3 + x.astype(jnp.float32), 0.0).astype(o_ref.dtype)


def fold_bn(gamma, beta, mean, var):
    scale = gamma / jnp.sqrt(var + EPS)
    shift = beta - mean * scale
    return scale, shift


def _vmem_capacity_bytes():
    """Physical VMEM capacity; conservative (v7x-safe) 64 MiB fallback."""
    try:
        info = pltpu.get_tpu_info()
        for name in ("vmem_capacity_bytes", "vmem_size_bytes", "vmem_bytes"):
            v = getattr(info, name, None)
            if v:
                return int(v)
    except Exception:
        pass
    return 64 << 20


def _tile_footprint_bytes(TL, Cin, Cout, P, *, x_buffers=2, w_buffers=2, stream_itemsize=2):
    s = stream_itemsize
    streams = x_buffers * s * Cin * TL + 2 * 4 * Cout * TL + 2 * s * Cin * 2     # x, out, halo
    weights = w_buffers * (s * (P * Cin + 3 * P * P + Cout * P) + 4 * (2 * P + Cout))
    interm = 4 * TL * (6 * P + Cout)          # f32 h1 / shifted taps / h2 / epilogue
    return int(streams + weights + interm)


def _choose_tile_l(L, Cin, Cout, P, budget_bytes, *, max_tile_l=None, stream_itemsize=2):
    """Largest multiple-of-128 divisor of L whose tile footprint fits the budget."""
    cap_l = L if max_tile_l is None else min(L, max_tile_l)
    cands = []
    if cap_l >= 128:
        cands = [tl for tl in range((cap_l // 128) * 128, 127, -128) if L % tl == 0]
    if not cands:
        # No multiple-of-128 divisor (e.g. L < 128): single full-length tile.
        # TODO(synk): pad L / masked tail for very large L with no such divisor.
        cands = [L]
    for tl in cands:
        if _tile_footprint_bytes(tl, Cin, Cout, P,
                                 stream_itemsize=stream_itemsize) <= budget_bytes:
            return tl
    return cands[-1]


def bottleneck1d_pallas(x_ncl, params, *, compute_dtype=jnp.bfloat16, max_tile_l=None):
    """x_ncl: (N, Cin, L) float32, PyTorch NCL layout. Returns (N, Cout, L) float32."""
    N, Cin, L = x_ncl.shape
    W1, W2, W3 = params["W1"], params["W2"], params["W3"]   # torch layout (O, I, K)
    P = W1.shape[0]
    Cout = W3.shape[0]
    assert Cout == Cin, "identity residual requires in_planes == planes * expansion"

    s1, b1 = fold_bn(*params["bn1"])
    s2, b2 = fold_bn(*params["bn2"])
    s3, b3 = fold_bn(*params["bn3"])

    cdt = compute_dtype
    # Fold BN scales into conv weights (f32), then cast the streamed operands.
    w1 = (W1[:, :, 0] * s1[:, None]).astype(cdt)                     # (P, Cin)
    w2f = W2 * s2[:, None, None]                                     # (P, P, 3) f32
    w3 = (W3[:, :, 0] * s3[:, None]).astype(cdt)                     # (Cout, P)
    b1c = b1[:, None].astype(jnp.float32)                            # (P, 1)
    b2c = b2[:, None].astype(jnp.float32)                            # (P, 1)
    b3c = b3[:, None].astype(jnp.float32)                            # (Cout, 1)

    fuse_taps = P < 128
    if fuse_taps:
        w2 = jnp.concatenate([w2f[:, :, 0], w2f[:, :, 1], w2f[:, :, 2]],
                             axis=1).astype(cdt)                     # (P, 3P)
    else:
        w2 = jnp.moveaxis(w2f, 2, 0).astype(cdt)                     # (3, P, P)

    itemsize = jnp.dtype(cdt).itemsize
    cap = _vmem_capacity_bytes()
    budget = int(0.70 * cap)
    TL = _choose_tile_l(L, Cin, Cout, P, budget,
                        max_tile_l=max_tile_l, stream_itemsize=itemsize)
    T = L // TL
    assert L % TL == 0

    # Deeper x pipelining only when VMEM comfortably allows (v5e/v6e, not v7x).
    x_buffers = 2
    if cap >= (96 << 20) and _tile_footprint_bytes(
            TL, Cin, Cout, P, x_buffers=3, stream_itemsize=itemsize) <= budget:
        x_buffers = 3

    fp = _tile_footprint_bytes(TL, Cin, Cout, P,
                               x_buffers=x_buffers, stream_itemsize=itemsize)
    vmem_limit = int(min(max(2 * fp, 32 << 20), int(0.85 * cap)))

    x_c = x_ncl.astype(cdt)

    # Halo columns per (batch, L-tile), built from strided slices (no jnp.pad):
    #   prev[t] = x[:, :, t*TL - 1]   (zero for t == 0)
    #   nxt[t]  = x[:, :, (t+1)*TL]   (zero for t == T-1)
    zero_col = jnp.zeros((N, Cin, 1), cdt)
    prev = jnp.concatenate([zero_col, x_c[:, :, TL - 1:L - 1:TL]], axis=2)     # (N, Cin, T)
    nxt = jnp.concatenate([x_c[:, :, TL:L:TL], zero_col], axis=2)              # (N, Cin, T)
    halo = jnp.stack([prev, nxt], axis=-1).transpose(0, 2, 1, 3)               # (N, T, Cin, 2)

    kernel = functools.partial(bottleneck1d_kernel, fuse_taps=fuse_taps)
    out_shape = jax.ShapeDtypeStruct((N, Cout, L), jnp.float32)

    def build_specs(use_pipeline_mode):
        def const_spec(shape):
            nd = len(shape)
            kw = {"pipeline_mode": pl.Buffered(1)} if use_pipeline_mode else {}
            return pl.BlockSpec(shape, lambda n, t: (0,) * nd, **kw)

        x_kw = ({"pipeline_mode": pl.Buffered(x_buffers)}
                if (use_pipeline_mode and x_buffers != 2) else {})
        in_specs = [
            pl.BlockSpec((None, Cin, TL), lambda n, t: (n, 0, t), **x_kw),       # x tile
            pl.BlockSpec((None, None, Cin, 2), lambda n, t: (n, t, 0, 0)),       # halo
            const_spec(w1.shape),                                                # w1 (scaled)
            const_spec(b1c.shape),                                               # bn1 shift
            const_spec(w2.shape),                                                # w2 (scaled)
            const_spec(b2c.shape),                                               # bn2 shift
            const_spec(w3.shape),                                                # w3 (scaled)
            const_spec(b3c.shape),                                               # bn3 shift
        ]
        out_spec = pl.BlockSpec((None, Cout, TL), lambda n, t: (n, 0, t))
        return in_specs, out_spec

    def run(use_pipeline_mode):
        in_specs, out_spec = build_specs(use_pipeline_mode)
        fn = pl.pallas_call(
            kernel,
            out_shape=out_shape,
            grid_spec=pltpu.PrefetchScalarGridSpec(
                num_scalar_prefetch=0,
                grid=(N, T),
                in_specs=in_specs,
                out_specs=out_spec),
            compiler_params=pltpu.CompilerParams(
                dimension_semantics=("parallel", "parallel"),
                vmem_limit_bytes=vmem_limit),
        )
        return fn(x_c, halo, w1, b1c, w2, b2c, w3, b3c)

    try:
        return run(True)
    except Exception:
        # pipeline_mode / pl.Buffered not supported by this JAX version:
        # fall back to default double-buffering for every operand.
        return run(False)


def bottleneck1d_reference(x, params):
    """Plain-JAX f32 reference in NCL layout (cross-correlation, like torch)."""
    dn = ("NCH", "OIH", "NCH")

    def bn(h, stats):
        gamma, beta, mean, var = stats
        return ((h - mean[None, :, None]) / jnp.sqrt(var[None, :, None] + EPS)
                * gamma[None, :, None] + beta[None, :, None])

    h = lax.conv_general_dilated(x, params["W1"], (1,), [(0, 0)], dimension_numbers=dn)
    h = jax.nn.relu(bn(h, params["bn1"]))
    h = lax.conv_general_dilated(h, params["W2"], (1,), [(1, 1)], dimension_numbers=dn)
    h = jax.nn.relu(bn(h, params["bn2"]))
    h = lax.conv_general_dilated(h, params["W3"], (1,), [(0, 0)], dimension_numbers=dn)
    h = bn(h, params["bn3"])
    return jax.nn.relu(h + x)


def make_params(key, in_planes, planes):
    ks = jax.random.split(key, 6)
    out3 = planes * EXPANSION

    def bn_stats(k, c):
        k1, k2, k3, k4 = jax.random.split(k, 4)
        gamma = 1.0 + 0.1 * jax.random.normal(k1, (c,), jnp.float32)
        beta = 0.1 * jax.random.normal(k2, (c,), jnp.float32)
        mean = 0.1 * jax.random.normal(k3, (c,), jnp.float32)
        var = jnp.abs(jax.random.normal(k4, (c,), jnp.float32)) + 0.5
        return (gamma, beta, mean, var)

    return {
        "W1": 0.1 * jax.random.normal(ks[0], (planes, in_planes, 1), jnp.float32),
        "W2": 0.1 * jax.random.normal(ks[1], (planes, planes, 3), jnp.float32),
        "W3": 0.1 * jax.random.normal(ks[2], (out3, planes, 1), jnp.float32),
        "bn1": bn_stats(ks[3], planes),
        "bn2": bn_stats(ks[4], planes),
        "bn3": bn_stats(ks[5], out3),
    }


if __name__ == "__main__":
    key = jax.random.PRNGKey(0)
    k_x, k_p = jax.random.split(key)

    # Small, vreg-aligned demo: L=256 with max_tile_l=128 -> grid (2, 2), which
    # exercises the multi-tile halo path and splits evenly across TensorCores.
    N, planes, L = 2, 8, 256
    in_planes = planes * EXPANSION          # 32, so identity residual is valid

    x = jax.random.normal(k_x, (N, in_planes, L), jnp.float32)
    params = make_params(k_p, in_planes, planes)

    out = bottleneck1d_pallas(x, params, max_tile_l=128)
    out = jax.block_until_ready(out)

    ref = bottleneck1d_reference(x, params)
    assert out.shape == ref.shape == (N, in_planes, L)
    max_err = jnp.max(jnp.abs(out.astype(jnp.float32) - ref))
    # bf16-streamed matmul operands with f32 accumulation -> loosened tolerance.
    assert jnp.allclose(out, ref, atol=5e-2, rtol=5e-2), f"max abs err {max_err}"

    print("KERNEL_OK")
</pallas_src>

<mosaic_0001>
module attributes {stable_mosaic.version = 11 : i64} {
  func.func @bottleneck1d_kernel(%arg0: i32, %arg1: i32, %arg2: memref<1x32x128xbf16, #tpu.memory_space<vmem>>, %arg3: memref<1x1x32x2xbf16, #tpu.memory_space<vmem>>, %arg4: memref<8x32xbf16, #tpu.memory_space<vmem>>, %arg5: memref<8x1xf32, #tpu.memory_space<vmem>>, %arg6: memref<8x24xbf16, #tpu.memory_space<vmem>>, %arg7: memref<8x1xf32, #tpu.memory_space<vmem>>, %arg8: memref<32x8xbf16, #tpu.memory_space<vmem>>, %arg9: memref<32x1xf32, #tpu.memory_space<vmem>>, %arg10: memref<1x32x128xf32, #tpu.memory_space<vmem>>) attributes {dimension_semantics = [#tpu.dimension_semantics<parallel>, #tpu.dimension_semantics<parallel>], iteration_bounds = array<i64: 2, 2>, scalar_prefetch = 0 : i64, scratch_operands = 0 : i64, tpu.core_type = #tpu.core_type<tc>, window_params = [{transform_indices = @transform_0, window_bounds = array<i64: 1, 32, 128>}, {transform_indices = @transform_1, window_bounds = array<i64: 1, 1, 32, 2>}, {pipeline_mode = #tpu.pipeline_mode<synchronous>, transform_indices = @transform_2, window_bounds = array<i64: 8, 32>}, {pipeline_mode = #tpu.pipeline_mode<synchronous>, transform_indices = @transform_3, window_bounds = array<i64: 8, 1>}, {pipeline_mode = #tpu.pipeline_mode<synchronous>, transform_indices = @transform_4, window_bounds = array<i64: 8, 24>}, {pipeline_mode = #tpu.pipeline_mode<synchronous>, transform_indices = @transform_5, window_bounds = array<i64: 8, 1>}, {pipeline_mode = #tpu.pipeline_mode<synchronous>, transform_indices = @transform_6, window_bounds = array<i64: 32, 8>}, {pipeline_mode = #tpu.pipeline_mode<synchronous>, transform_indices = @transform_7, window_bounds = array<i64: 32, 1>}, {transform_indices = @transform_8, window_bounds = array<i64: 1, 32, 128>}]} {
    %c0 = arith.constant 0 : index
    %c0_0 = arith.constant 0 : index
    %c0_1 = arith.constant 0 : index
    %0 = vector.load %arg2[%c0, %c0_0, %c0_1] : memref<1x32x128xbf16, #tpu.memory_space<vmem>>, vector<1x32x128xbf16>
    %1 = vector.shape_cast %0 : vector<1x32x128xbf16> to vector<32x128xbf16>
    %c0_2 = arith.constant 0 : index
    %c0_3 = arith.constant 0 : index
    %c0_4 = arith.constant 0 : index
    %c0_5 = arith.constant 0 : index
    %2 = vector.load %arg3[%c0_2, %c0_3, %c0_4, %c0_5] : memref<1x1x32x2xbf16, #tpu.memory_space<vmem>>, vector<1x1x32x2xbf16>
    %3 = vector.shape_cast %2 : vector<1x1x32x2xbf16> to vector<32x2xbf16>
    %c0_6 = arith.constant 0 : index
    %c0_7 = arith.constant 0 : index
    %4 = vector.load %arg4[%c0_6, %c0_7] : memref<8x32xbf16, #tpu.memory_space<vmem>>, vector<8x32xbf16>
    %c0_8 = arith.constant 0 : index
    %c0_9 = arith.constant 0 : index
    %5 = vector.load %arg5[%c0_8, %c0_9] : memref<8x1xf32, #tpu.memory_space<vmem>>, vector<8x1xf32>
    %cst = arith.constant dense<0.000000e+00> : vector<8x128xf32>
    %6 = tpu.matmul %4, %1, %cst {dimension_numbers = #tpu.dot_dimension_numbers<[1], [0], [0], [1], [0, 0, 1, 1], [], []>} : vector<8x32xbf16>, vector<32x128xbf16>, vector<8x128xf32> -> vector<8x128xf32>
    %7 = vector.broadcast %5 : vector<8x1xf32> to vector<8x128xf32>
    %8 = arith.addf %6, %7 : vector<8x128xf32>
    %cst_10 = arith.constant 0.000000e+00 : f32
    %9 = vector.broadcast %cst_10 : f32 to vector<8x128xf32>
    %10 = arith.maximumf %8, %9 : vector<8x128xf32>
    %cst_11 = arith.constant dense<0.000000e+00> : vector<8x2xf32>
    %11 = tpu.matmul %4, %3, %cst_11 {dimension_numbers = #tpu.dot_dimension_numbers<[1], [0], [0], [1], [0, 0, 1, 1], [], []>} : vector<8x32xbf16>, vector<32x2xbf16>, vector<8x2xf32> -> vector<8x2xf32>
    %12 = vector.broadcast %5 : vector<8x1xf32> to vector<8x2xf32>
    %13 = arith.addf %11, %12 : vector<8x2xf32>
    %cst_12 = arith.constant 0.000000e+00 : f32
    %14 = vector.broadcast %cst_12 : f32 to vector<8x2xf32>
    %15 = arith.maximumf %13, %14 : vector<8x2xf32>
    %c0_i32 = arith.constant 0 : i32
    %16 = arith.cmpi eq, %arg1, %c0_i32 : i32
    %17 = vector.extract_strided_slice %15 {offsets = [0, 0], sizes = [8, 1], strides = [1, 1]} : vector<8x2xf32> to vector<8x1xf32>
    %cst_13 = arith.constant 0.000000e+00 : f32
    %18 = vector.broadcast %cst_13 : f32 to vector<8x1xf32>
    %19 = arith.select %16, %18, %17 : vector<8x1xf32>
    %c1_i32 = arith.constant 1 : i32
    %20 = arith.cmpi eq, %arg1, %c1_i32 : i32
    %21 = vector.extract_strided_slice %15 {offsets = [0, 1], sizes = [8, 1], strides = [1, 1]} : vector<8x2xf32> to vector<8x1xf32>
    %cst_14 = arith.constant 0.000000e+00 : f32
    %22 = vector.broadcast %cst_14 : f32 to vector<8x1xf32>
    %23 = arith.select %20, %22, %21 : vector<8x1xf32>
    %24 = tpu.iota {dimensions = array<i32: 1>} : vector<8x128xi32>
    %c0_i32_15 = arith.constant 0 : i32
    %25 = vector.broadcast %c0_i32_15 : i32 to vector<8x128xi32>
    %26 = arith.cmpi eq, %24, %25 : vector<8x128xi32>
    %c1_i32_16 = arith.constant 1 : i32
    %27 = tpu.dynamic_rotate %10 by %c1_i32_16 dim 1 : vector<8x128xf32>, i32 -> vector<8x128xf32>
    %28 = vector.shape_cast %19 : vector<8x1xf32> to vector<8x1xf32>
    %29 = vector.broadcast %28 : vector<8x1xf32> to vector<8x128xf32>
    %30 = arith.select %26, %29, %27 : vector<8x128xi1>, vector<8x128xf32>
    %c127_i32 = arith.constant 127 : i32
    %31 = vector.broadcast %c127_i32 : i32 to vector<8x128xi32>
    %32 = arith.cmpi eq, %24, %31 : vector<8x128xi32>
    %c127_i32_17 = arith.constant 127 : i32
    %33 = tpu.dynamic_rotate %10 by %c127_i32_17 dim 1 : vector<8x128xf32>, i32 -> vector<8x128xf32>
    %34 = vector.shape_cast %23 : vector<8x1xf32> to vector<8x1xf32>
    %35 = vector.broadcast %34 : vector<8x1xf32> to vector<8x128xf32>
    %36 = arith.select %32, %35, %33 : vector<8x128xi1>, vector<8x128xf32>
    %c0_18 = arith.constant 0 : index
    %c0_19 = arith.constant 0 : index
    %37 = vector.load %arg7[%c0_18, %c0_19] : memref<8x1xf32, #tpu.memory_space<vmem>>, vector<8x1xf32>
    %38 = tpu.concatenate %30, %10, %36 in 0 : vector<8x128xf32>, vector<8x128xf32>, vector<8x128xf32> -> vector<24x128xf32>
    %39 = arith.truncf %38 : vector<24x128xf32> to vector<24x128xbf16>
    %c0_20 = arith.constant 0 : index
    %c0_21 = arith.constant 0 : index
    %40 = vector.load %arg6[%c0_20, %c0_21] : memref<8x24xbf16, #tpu.memory_space<vmem>>, vector<8x24xbf16>
    %cst_22 = arith.constant dense<0.000000e+00> : vector<8x128xf32>
    %41 = tpu.matmul %40, %39, %cst_22 {dimension_numbers = #tpu.dot_dimension_numbers<[1], [0], [0], [1], [0, 0, 1, 1], [], []>} : vector<8x24xbf16>, vector<24x128xbf16>, vector<8x128xf32> -> vector<8x128xf32>
    %42 = vector.broadcast %37 : vector<8x1xf32> to vector<8x128xf32>
    %43 = arith.addf %41, %42 : vector<8x128xf32>
    %cst_23 = arith.constant 0.000000e+00 : f32
    %44 = vector.broadcast %cst_23 : f32 to vector<8x128xf32>
    %45 = arith.maximumf %43, %44 : vector<8x128xf32>
    %c0_24 = arith.constant 0 : index
    %c0_25 = arith.constant 0 : index
    %46 = vector.load %arg8[%c0_24, %c0_25] : memref<32x8xbf16, #tpu.memory_space<vmem>>, vector<32x8xbf16>
    %47 = arith.truncf %45 : vector<8x128xf32> to vector<8x128xbf16>
    %cst_26 = arith.constant dense<0.000000e+00> : vector<32x128xf32>
    %48 = tpu.matmul %46, %47, %cst_26 {dimension_numbers = #tpu.dot_dimension_numbers<[1], [0], [0], [1], [0, 0, 1, 1], [], []>} : vector<32x8xbf16>, vector<8x128xbf16>, vector<32x128xf32> -> vector<32x128xf32>
    %c0_27 = arith.constant 0 : index
    %c0_28 = arith.constant 0 : index
    %49 = vector.load %arg9[%c0_27, %c0_28] : memref<32x1xf32, #tpu.memory_space<vmem>>, vector<32x1xf32>
    %50 = vector.broadcast %49 : vector<32x1xf32> to vector<32x128xf32>
    %51 = arith.addf %48, %50 : vector<32x128xf32>
    %52 = arith.extf %1 : vector<32x128xbf16> to vector<32x128xf32>
    %53 = arith.addf %51, %52 : vector<32x128xf32>
    %cst_29 = arith.constant 0.000000e+00 : f32
    %54 = vector.broadcast %cst_29 : f32 to vector<32x128xf32>
    %55 = arith.maximumf %53, %54 : vector<32x128xf32>
    %c0_30 = arith.constant 0 : index
    %c0_31 = arith.constant 0 : index
    %c0_32 = arith.constant 0 : index
    %56 = vector.load %arg10[%c0_30, %c0_31, %c0_32] : memref<1x32x128xf32, #tpu.memory_space<vmem>>, vector<1x32x128xf32>
    %57 = vector.shape_cast %56 : vector<1x32x128xf32> to vector<32x128xf32>
    %58 = vector.shape_cast %55 : vector<32x128xf32> to vector<1x32x128xf32>
    tpu.vector_store %arg10[%c0_30, %c0_31, %c0_32], %58 {strides = array<i32>} : memref<1x32x128xf32, #tpu.memory_space<vmem>>, vector<1x32x128xf32>,
    return
  }
  func.func @transform_0(%arg0: i32, %arg1: i32) -> (i32, i32, i32) {
    %c0_i32 = arith.constant 0 : i32
    %c0_i32_0 = arith.constant 0 : i32
    return %arg0, %c0_i32, %arg1 : i32, i32, i32
  }
  func.func @transform_1(%arg0: i32, %arg1: i32) -> (i32, i32, i32, i32) {
    %c0_i32 = arith.constant 0 : i32
    %c0_i32_0 = arith.constant 0 : i32
    %c0_i32_1 = arith.constant 0 : i32
    return %arg0, %arg1, %c0_i32, %c0_i32_0 : i32, i32, i32, i32
  }
  func.func @transform_2(%arg0: i32, %arg1: i32) -> (i32, i32) {
    %c0_i32 = arith.constant 0 : i32
    %c0_i32_0 = arith.constant 0 : i32
    %c0_i32_1 = arith.constant 0 : i32
    return %c0_i32, %c0_i32_0 : i32, i32
  }
  func.func @transform_3(%arg0: i32, %arg1: i32) -> (i32, i32) {
    %c0_i32 = arith.constant 0 : i32
    %c0_i32_0 = arith.constant 0 : i32
    %c0_i32_1 = arith.constant 0 : i32
    return %c0_i32, %c0_i32_0 : i32, i32
  }
  func.func @transform_4(%arg0: i32, %arg1: i32) -> (i32, i32) {
    %c0_i32 = arith.constant 0 : i32
    %c0_i32_0 = arith.constant 0 : i32
    %c0_i32_1 = arith.constant 0 : i32
    return %c0_i32, %c0_i32_0 : i32, i32
  }
  func.func @transform_5(%arg0: i32, %arg1: i32) -> (i32, i32) {
    %c0_i32 = arith.constant 0 : i32
    %c0_i32_0 = arith.constant 0 : i32
    %c0_i32_1 = arith.constant 0 : i32
    return %c0_i32, %c0_i32_0 : i32, i32
  }
  func.func @transform_6(%arg0: i32, %arg1: i32) -> (i32, i32) {
    %c0_i32 = arith.constant 0 : i32
    %c0_i32_0 = arith.constant 0 : i32
    %c0_i32_1 = arith.constant 0 : i32
    return %c0_i32, %c0_i32_0 : i32, i32
  }
  func.func @transform_7(%arg0: i32, %arg1: i32) -> (i32, i32) {
    %c0_i32 = arith.constant 0 : i32
    %c0_i32_0 = arith.constant 0 : i32
    %c0_i32_1 = arith.constant 0 : i32
    return %c0_i32, %c0_i32_0 : i32, i32
  }
  func.func @transform_8(%arg0: i32, %arg1: i32) -> (i32, i32, i32) {
    %c0_i32 = arith.constant 0 : i32
    %c0_i32_0 = arith.constant 0 : i32
    return %arg0, %c0_i32, %arg1 : i32, i32, i32
  }
}

module attributes {stable_mosaic.version = 11 : i64} {
  func.func @bottleneck1d_kernel(%arg0: i32, %arg1: i32, %arg2: memref<1x32x128xbf16, #tpu.memory_space<vmem>>, %arg3: memref<1x1x32x2xbf16, #tpu.memory_space<vmem>>, %arg4: memref<8x32xbf16, #tpu.memory_space<vmem>>, %arg5: memref<8x1xf32, #tpu.memory_space<vmem>>, %arg6: memref<8x24xbf16, #tpu.memory_space<vmem>>, %arg7: memref<8x1xf32, #tpu.memory_space<vmem>>, %arg8: memref<32x8xbf16, #tpu.memory_space<vmem>>, %arg9: memref<32x1xf32, #tpu.memory_space<vmem>>, %arg10: memref<1x32x128xf32, #tpu.memory_space<vmem>>) attributes {dimension_semantics = [#tpu.dimension_semantics<parallel>, #tpu.dimension_semantics<parallel>], iteration_bounds = array<i64: 2, 2>, scalar_prefetch = 0 : i64, scratch_operands = 0 : i64, tpu.core_type = #tpu.core_type<tc>, window_params = [{transform_indices = @transform_0, window_bounds = array<i64: 1, 32, 128>}, {transform_indices = @transform_1, window_bounds = array<i64: 1, 1, 32, 2>}, {pipeline_mode = #tpu.pipeline_mode<synchronous>, transform_indices = @transform_2, window_bounds = array<i64: 8, 32>}, {pipeline_mode = #tpu.pipeline_mode<synchronous>, transform_indices = @transform_3, window_bounds = array<i64: 8, 1>}, {pipeline_mode = #tpu.pipeline_mode<synchronous>, transform_indices = @transform_4, window_bounds = array<i64: 8, 24>}, {pipeline_mode = #tpu.pipeline_mode<synchronous>, transform_indices = @transform_5, window_bounds = array<i64: 8, 1>}, {pipeline_mode = #tpu.pipeline_mode<synchronous>, transform_indices = @transform_6, window_bounds = array<i64: 32, 8>}, {pipeline_mode = #tpu.pipeline_mode<synchronous>, transform_indices = @transform_7, window_bounds = array<i64: 32, 1>}, {transform_indices = @transform_8, window_bounds = array<i64: 1, 32, 128>}]} {
    %c0 = arith.constant 0 : index
    %c0_0 = arith.constant 0 : index
    %c0_1 = arith.constant 0 : index
    %0 = vector.load %arg2[%c0, %c0_0, %c0_1] : memref<1x32x128xbf16, #tpu.memory_space<vmem>>, vector<1x32x128xbf16>
    %1 = vector.shape_cast %0 : vector<1x32x128xbf16> to vector<32x128xbf16>
    %c0_2 = arith.constant 0 : index
    %c0_3 = arith.constant 0 : index
    %c0_4 = arith.constant 0 : index
    %c0_5 = arith.constant 0 : index
    %2 = vector.load %arg3[%c0_2, %c0_3, %c0_4, %c0_5] : memref<1x1x32x2xbf16, #tpu.memory_space<vmem>>, vector<1x1x32x2xbf16>
    %3 = vector.shape_cast %2 : vector<1x1x32x2xbf16> to vector<32x2xbf16>
    %c0_6 = arith.constant 0 : index
    %c0_7 = arith.constant 0 : index
    %4 = vector.load %arg4[%c0_6, %c0_7] : memref<8x32xbf16, #tpu.memory_space<vmem>>, vector<8x32xbf16>
    %c0_8 = arith.constant 0 : index
    %c0_9 = arith.constant 0 : index
    %5 = vector.load %arg5[%c0_8, %c0_9] : memref<8x1xf32, #tpu.memory_space<vmem>>, vector<8x1xf32>
    %cst = arith.constant dense<0.000000e+00> : vector<8x128xf32>
    %6 = tpu.matmul %4, %1, %cst {dimension_numbers = #tpu.dot_dimension_numbers<[1], [0], [0], [1], [0, 0, 1, 1], [], []>} : vector<8x32xbf16>, vector<32x128xbf16>, vector<8x128xf32> -> vector<8x128xf32>
    %7 = vector.broadcast %5 : vector<8x1xf32> to vector<8x128xf32>
    %8 = arith.addf %6, %7 : vector<8x128xf32>
    %cst_10 = arith.constant 0.000000e+00 : f32
    %9 = vector.broadcast %cst_10 : f32 to vector<8x128xf32>
    %10 = arith.maximumf %8, %9 : vector<8x128xf32>
    %cst_11 = arith.constant dense<0.000000e+00> : vector<8x2xf32>
    %11 = tpu.matmul %4, %3, %cst_11 {dimension_numbers = #tpu.dot_dimension_numbers<[1], [0], [0], [1], [0, 0, 1, 1], [], []>} : vector<8x32xbf16>, vector<32x2xbf16>, vector<8x2xf32> -> vector<8x2xf32>
    %12 = vector.broadcast %5 : vector<8x1xf32> to vector<8x2xf32>
    %13 = arith.addf %11, %12 : vector<8x2xf32>
    %cst_12 = arith.constant 0.000000e+00 : f32
    %14 = vector.broadcast %cst_12 : f32 to vector<8x2xf32>
    %15 = arith.maximumf %13, %14 : vector<8x2xf32>
    %c0_i32 = arith.constant 0 : i32
    %16 = arith.cmpi eq, %arg1, %c0_i32 : i32
    %17 = vector.extract_strided_slice %15 {offsets = [0, 0], sizes = [8, 1], strides = [1, 1]} : vector<8x2xf32> to vector<8x1xf32>
    %cst_13 = arith.constant 0.000000e+00 : f32
    %18 = vector.broadcast %cst_13 : f32 to vector<8x1xf32>
    %19 = arith.select %16, %18, %17 : vector<8x1xf32>
    %c1_i32 = arith.constant 1 : i32
    %20 = arith.cmpi eq, %arg1, %c1_i32 : i32
    %21 = vector.extract_strided_slice %15 {offsets = [0, 1], sizes = [8, 1], strides = [1, 1]} : vector<8x2xf32> to vector<8x1xf32>
    %cst_14 = arith.constant 0.000000e+00 : f32
    %22 = vector.broadcast %cst_14 : f32 to vector<8x1xf32>
    %23 = arith.select %20, %22, %21 : vector<8x1xf32>
    %24 = tpu.iota {dimensions = array<i32: 1>} : vector<8x128xi32>
    %c0_i32_15 = arith.constant 0 : i32
    %25 = vector.broadcast %c0_i32_15 : i32 to vector<8x128xi32>
    %26 = arith.cmpi eq, %24, %25 : vector<8x128xi32>
    %c1_i32_16 = arith.constant 1 : i32
    %27 = tpu.dynamic_rotate %10 by %c1_i32_16 dim 1 : vector<8x128xf32>, i32 -> vector<8x128xf32>
    %28 = vector.shape_cast %19 : vector<8x1xf32> to vector<8x1xf32>
    %29 = vector.broadcast %28 : vector<8x1xf32> to vector<8x128xf32>
    %30 = arith.select %26, %29, %27 : vector<8x128xi1>, vector<8x128xf32>
    %c127_i32 = arith.constant 127 : i32
    %31 = vector.broadcast %c127_i32 : i32 to vector<8x128xi32>
    %32 = arith.cmpi eq, %24, %31 : vector<8x128xi32>
    %c127_i32_17 = arith.constant 127 : i32
    %33 = tpu.dynamic_rotate %10 by %c127_i32_17 dim 1 : vector<8x128xf32>, i32 -> vector<8x128xf32>
    %34 = vector.shape_cast %23 : vector<8x1xf32> to vector<8x1xf32>
    %35 = vector.broadcast %34 : vector<8x1xf32> to vector<8x128xf32>
    %36 = arith.select %32, %35, %33 : vector<8x128xi1>, vector<8x128xf32>
    %c0_18 = arith.constant 0 : index
    %c0_19 = arith.constant 0 : index
    %37 = vector.load %arg7[%c0_18, %c0_19] : memref<8x1xf32, #tpu.memory_space<vmem>>, vector<8x1xf32>
    %38 = tpu.concatenate %30, %10, %36 in 0 : vector<8x128xf32>, vector<8x128xf32>, vector<8x128xf32> -> vector<24x128xf32>
    %39 = arith.truncf %38 : vector<24x128xf32> to vector<24x128xbf16>
    %c0_20 = arith.constant 0 : index
    %c0_21 = arith.constant 0 : index
    %40 = vector.load %arg6[%c0_20, %c0_21] : memref<8x24xbf16, #tpu.memory_space<vmem>>, vector<8x24xbf16>
    %cst_22 = arith.constant dense<0.000000e+00> : vector<8x128xf32>
    %41 = tpu.matmul %40, %39, %cst_22 {dimension_numbers = #tpu.dot_dimension_numbers<[1], [0], [0], [1], [0, 0, 1, 1], [], []>} : vector<8x24xbf16>, vector<24x128xbf16>, vector<8x128xf32> -> vector<8x128xf32>
    %42 = vector.broadcast %37 : vector<8x1xf32> to vector<8x128xf32>
    %43 = arith.addf %41, %42 : vector<8x128xf32>
    %cst_23 = arith.constant 0.000000e+00 : f32
    %44 = vector.broadcast %cst_23 : f32 to vector<8x128xf32>
    %45 = arith.maximumf %43, %44 : vector<8x128xf32>
    %c0_24 = arith.constant 0 : index
    %c0_25 = arith.constant 0 : index
    %46 = vector.load %arg8[%c0_24, %c0_25] : memref<32x8xbf16, #tpu.memory_space<vmem>>, vector<32x8xbf16>
    %47 = arith.truncf %45 : vector<8x128xf32> to vector<8x128xbf16>
    %cst_26 = arith.constant dense<0.000000e+00> : vector<32x128xf32>
    %48 = tpu.matmul %46, %47, %cst_26 {dimension_numbers = #tpu.dot_dimension_numbers<[1], [0], [0], [1], [0, 0, 1, 1], [], []>} : vector<32x8xbf16>, vector<8x128xbf16>, vector<32x128xf32> -> vector<32x128xf32>
    %c0_27 = arith.constant 0 : index
    %c0_28 = arith.constant 0 : index
    %49 = vector.load %arg9[%c0_27, %c0_28] : memref<32x1xf32, #tpu.memory_space<vmem>>, vector<32x1xf32>
    %50 = vector.broadcast %49 : vector<32x1xf32> to vector<32x128xf32>
    %51 = arith.addf %48, %50 : vector<32x128xf32>
    %52 = arith.extf %1 : vector<32x128xbf16> to vector<32x128xf32>
    %53 = arith.addf %51, %52 : vector<32x128xf32>
    %cst_29 = arith.constant 0.000000e+00 : f32
    %54 = vector.broadcast %cst_29 : f32 to vector<32x128xf32>
    %55 = arith.maximumf %53, %54 : vector<32x128xf32>
    %c0_30 = arith.constant 0 : index
    %c0_31 = arith.constant 0 : index
    %c0_32 = arith.constant 0 : index
    %56 = vector.load %arg10[%c0_30, %c0_31, %c0_32] : memref<1x32x128xf32, #tpu.memory_space<vmem>>, vector<1x32x128xf32>
    %57 = vector.shape_cast %56 : vector<1x32x128xf32> to vector<32x128xf32>
    %58 = vector.shape_cast %55 : vector<32x128xf32> to vector<1x32x128xf32>
    tpu.vector_store %arg10[%c0_30, %c0_31, %c0_32], %58 {strides = array<i32>} : memref<1x32x128xf32, #tpu.memory_space<vmem>>, vector<1x32x128xf32>,
    return
  }
  func.func @transform_0(%arg0: i32, %arg1: i32) -> (i32, i32, i32) {
    %c0_i32 = arith.constant 0 : i32
    %c0_i32_0 = arith.constant 0 : i32
    return %arg0, %c0_i32, %arg1 : i32, i32, i32
  }
  func.func @transform_1(%arg0: i32, %arg1: i32) -> (i32, i32, i32, i32) {
    %c0_i32 = arith.constant 0 : i32
    %c0_i32_0 = arith.constant 0 : i32
    %c0_i32_1 = arith.constant 0 : i32
    return %arg0, %arg1, %c0_i32, %c0_i32_0 : i32, i32, i32, i32
  }
  func.func @transform_2(%arg0: i32, %arg1: i32) -> (i32, i32) {
    %c0_i32 = arith.constant 0 : i32
    %c0_i32_0 = arith.constant 0 : i32
    %c0_i32_1 = arith.constant 0 : i32
    return %c0_i32, %c0_i32_0 : i32, i32
  }
  func.func @transform_3(%arg0: i32, %arg1: i32) -> (i32, i32) {
    %c0_i32 = arith.constant 0 : i32
    %c0_i32_0 = arith.constant 0 : i32
    %c0_i32_1 = arith.constant 0 : i32
    return %c0_i32, %c0_i32_0 : i32, i32
  }
  func.func @transform_4(%arg0: i32, %arg1: i32) -> (i32, i32) {
    %c0_i32 = arith.constant 0 : i32
    %c0_i32_0 = arith.constant 0 : i32
    %c0_i32_1 = arith.constant 0 : i32
    return %c0_i32, %c0_i32_0 : i32, i32
  }
  func.func @transform_5(%arg0: i32, %arg1: i32) -> (i32, i32) {
    %c0_i32 = arith.constant 0 : i32
    %c0_i32_0 = arith.constant 0 : i32
    %c0_i32_1 = arith.constant 0 : i32
    return %c0_i32, %c0_i32_0 : i32, i32
  }
  func.func @transform_6(%arg0: i32, %arg1: i32) -> (i32, i32) {
    %c0_i32 = arith.constant 0 : i32
    %c0_i32_0 = arith.constant 0 : i32
    %c0_i32_1 = arith.constant 0 : i32
    return %c0_i32, %c0_i32_0 : i32, i32
  }
  func.func @transform_7(%arg0: i32, %arg1: i32) -> (i32, i32) {
    %c0_i32 = arith.constant 0 : i32
    %c0_i32_0 = arith.constant 0 : i32
    %c0_i32_1 = arith.constant 0 : i32
    return %c0_i32, %c0_i32_0 : i32, i32
  }
  func.func @transform_8(%arg0: i32, %arg1: i32) -> (i32, i32, i32) {
    %c0_i32 = arith.constant 0 : i32
    %c0_i32_0 = arith.constant 0 : i32
    return %arg0, %c0_i32, %arg1 : i32, i32, i32
  }
}

</mosaic_0001>

<llo_original>
// kernel: tpu_custom_call.1
$region0: #{tpu_custom_call.1}
  #allocation0 [shape = 'u32[]', space=smem, size = 0x4, offset = 0x4, fixed_abs, tag = 'smem constant byte address 0x4 - core index']
  #allocation1 [shape = 'u32[144,128]{1,0:T(1,128)}', space=vmem, size = 0x12000, scoped, tag = 'internal scratch']
  %s0 = inlined_call_operand.vmem [shape: bf16[2,32,256], index: 0, kind: input, shape index: {}]
  %s1 = inlined_call_operand.vmem [shape: bf16[2,2,32,2], index: 1, kind: input, shape index: {}]
  %s2 = inlined_call_operand.vmem [shape: bf16[8,32], index: 2, kind: input, shape index: {}]
  %s3 = inlined_call_operand.vmem [shape: f32[8,1], index: 3, kind: input, shape index: {}]
  %s4 = inlined_call_operand.vmem [shape: bf16[8,24], index: 4, kind: input, shape index: {}]
  %s5 = inlined_call_operand.vmem [shape: f32[8,1], index: 5, kind: input, shape index: {}]
  %s6 = inlined_call_operand.vmem [shape: bf16[32,8], index: 6, kind: input, shape index: {}]
  %s7 = inlined_call_operand.vmem [shape: f32[32,1], index: 7, kind: input, shape index: {}]
  %s8 = inlined_call_operand.hbm [shape: f32[2,32,256], index: 8, kind: output, shape index: {}]
  %s9 = sld [smem:[#allocation0]]
  $region106: #{tpu_custom_call.1} parent=0
    _
  %s11 = ssub.s32 1, %s9
  %s12 = scalar_select 0, %s11, %s9
  $region1: #{tpu_custom_call.1} parent=0
    #allocation2 [shape = 'u8[16384]{0}', space=vmem, size = 0x4000, scoped, tag = 'input window, operand 0']
    #allocation3 [shape = 'u8[32768]{0}', space=vmem, size = 0x8000, scoped, tag = 'output window, operand 0']
    #allocation4 [shape = 's32[2]{0}', space=sflag, size = 0x8, scoped, tag = 'scoped memory for tpu_custom_call.1']
    %13 = vsyncpa [#allocation4], 0
    %s14 = scalar_lea.sflag [#allocation4], 1
    %15 = vsyncpa %s14, 0
    loop: start=0, step=1, limit=6
    $region2: #{tpu_custom_call.1} parent=1 // loop_pre_header
      _
    $region3: #{tpu_custom_call.1} parent=1 // loop_header
      %s17 = sphi 0, %s21
      %p18 = scmp.ge.s32.totalorder %s17, 6
      %s24 = sphi 0, %s36
      %s25 = sphi 0, %s32
      %s26 = sphi 0, %s24
      %s27 = sphi 0, %s25
      %s28 = sphi 0, %s26
      %s29 = sphi 0, %s27
      %s41 = sphi 0, %s43
      %s44 = sphi 0, %s41
      %s45 = sphi 0, %s44
      %s61 = sphi 0, %s45
      %s69 = sphi 0, %s71
      %s72 = sphi 0, %s69
      %s73 = sphi 0, %s72
      %s89 = sphi 0, %s73
      %s93 = sphi 0, %s93
      %s95 = sphi 0, %s93
      %s96 = sphi 0, %s95
      %s110 = sphi 0, %s96
      %s114 = sphi 0, %s114
      %s116 = sphi 0, %s114
      %s117 = sphi 0, %s116
      %s131 = sphi 0, %s117
      %s135 = sphi 0, %s135
      %s137 = sphi 0, %s135
      %s138 = sphi 0, %s137
      %s152 = sphi 0, %s138
      %s156 = sphi 0, %s156
      %s158 = sphi 0, %s156
      %s159 = sphi 0, %s158
      %s173 = sphi 0, %s159
      %s177 = sphi 0, %s177
      %s179 = sphi 0, %s177
      %s180 = sphi 0, %s179
      %s194 = sphi 0, %s180
      %s198 = sphi 0, %s198
      %s200 = sphi 0, %s198
      %s201 = sphi 0, %s200
      %s215 = sphi 0, %s201
      %s223 = sphi 0, %s225
      %s226 = sphi 0, %s223
      %s227 = sphi 0, %s226
      %s243 = sphi 0, %s227
    $region4: #{tpu_custom_call.1} parent=1 // loop_header_branch
      %20 = sbr.rel (%p18) target = $region8
    $region5: #{tpu_custom_call.1} parent=1 // loop_body
      %s22 = ssub.s32 %s17, 1
      %s23 = ssub.s32 %s17, 2
      %s30 = sadd.s32 1, %s25
      %p31 = scmp.ge.s32.totalorder %s30, 2
      %s32 = scalar_select %p31, 0, %s30
      %s33 = sadd.s32 1, %s24
      %s34 = scalar_select %p31, %s33, %s24
      %p35 = scmp.ge.s32.totalorder %s34, 2
      %s36 = scalar_select %p35, 0, %s34
      %s37 = ssub.s32 %s24, %s36
      %s38 = ssub.s32 %s25, %s32
      %s39 = sor.u32 %s37, %s38
      %p40 = scmp.eq.s32.totalorder %s39, 0
      %s42 = sadd.s32 %s41, 1
      %s43 = scalar_select %p40, %s41, %s42
      %p46 = pneg %p40
      %p47 = scmp.eq.s32.totalorder %s17, 3
      %p48 = por %p46, %p47
      %p49 = scmp.ne.s32.totalorder %s41, %s44
      %p50 = scmp.eq.s32.totalorder %s17, 0
      %p51 = por %p49, %p50
      %p52 = scmp.ne.s32.totalorder %s41, %s44
      %p53 = scmp.eq.s32.totalorder %s22, 3
      %p54 = por %p52, %p53
      %p55 = scmp.ne.s32.totalorder %s44, %s45
      %p56 = scmp.eq.s32.totalorder %s22, 0
      %p57 = por %p55, %p56
      %p58 = scmp.ne.s32.totalorder %s44, %s45
      %p59 = scmp.eq.s32.totalorder %s23, 3
      %p60 = por %p58, %p59
      %p62 = scmp.ne.s32.totalorder %s45, %s61
      %p63 = scmp.eq.s32.totalorder %s23, 0
      %p64 = por %p62, %p63
      %s65 = ssub.s32 %s24, %s36
      %s66 = ssub.s32 %s25, %s32
      %s67 = sor.u32 %s65, %s66
      %p68 = scmp.eq.s32.totalorder %s67, 0
      %s70 = sadd.s32 %s69, 1
      %s71 = scalar_select %p68, %s69, %s70
      %p74 = pneg %p68
      %p75 = scmp.eq.s32.totalorder %s17, 3
      %p76 = por %p74, %p75
      %p77 = scmp.ne.s32.totalorder %s69, %s72
      %p78 = scmp.eq.s32.totalorder %s17, 0
      %p79 = por %p77, %p78
      %p80 = scmp.ne.s32.totalorder %s69, %s72
      %p81 = scmp.eq.s32.totalorder %s22, 3
      %p82 = por %p80, %p81
      %p83 = scmp.ne.s32.totalorder %s72, %s73
      %p84 = scmp.eq.s32.totalorder %s22, 0
      %p85 = por %p83, %p84
      %p86 = scmp.ne.s32.totalorder %s72, %s73
      %p87 = scmp.eq.s32.totalorder %s23, 3
      %p88 = por %p86, %p87
      %p90 = scmp.ne.s32.totalorder %s73, %s89
      %p91 = scmp.eq.s32.totalorder %s23, 0
      %p92 = por %p90, %p91
      %s94 = sadd.s32 %s93, 1
      %p97 = scmp.eq.s32.totalorder %s17, 3
      %p98 = scmp.ne.s32.totalorder %s93, %s95
      %p99 = scmp.eq.s32.totalorder %s17, 0
      %p100 = por %p98, %p99
      %p101 = scmp.ne.s32.totalorder %s93, %s95
      %p102 = scmp.eq.s32.totalorder %s22, 3
      %p103 = por %p101, %p102
      %p104 = scmp.ne.s32.totalorder %s95, %s96
      %p105 = scmp.eq.s32.totalorder %s22, 0
      %p106 = por %p104, %p105
      %p107 = scmp.ne.s32.totalorder %s95, %s96
      %p108 = scmp.eq.s32.totalorder %s23, 3
      %p109 = por %p107, %p108
      %p111 = scmp.ne.s32.totalorder %s96, %s110
      %p112 = scmp.eq.s32.totalorder %s23, 0
      %p113 = por %p111, %p112
      %s115 = sadd.s32 %s114, 1
      %p118 = scmp.eq.s32.totalorder %s17, 3
      %p119 = scmp.ne.s32.totalorder %s114, %s116
      %p120 = scmp.eq.s32.totalorder %s17, 0
      %p121 = por %p119, %p120
      %p122 = scmp.ne.s32.totalorder %s114, %s116
      %p123 = scmp.eq.s32.totalorder %s22, 3
      %p124 = por %p122, %p123
      %p125 = scmp.ne.s32.totalorder %s116, %s117
      %p126 = scmp.eq.s32.totalorder %s22, 0
      %p127 = por %p125, %p126
      %p128 = scmp.ne.s32.totalorder %s116, %s117
      %p129 = scmp.eq.s32.totalorder %s23, 3
      %p130 = por %p128, %p129
      %p132 = scmp.ne.s32.totalorder %s117, %s131
      %p133 = scmp.eq.s32.totalorder %s23, 0
      %p134 = por %p132, %p133
      %s136 = sadd.s32 %s135, 1
      %p139 = scmp.eq.s32.totalorder %s17, 3
      %p140 = scmp.ne.s32.totalorder %s135, %s137
      %p141 = scmp.eq.s32.totalorder %s17, 0
      %p142 = por %p140, %p141
      %p143 = scmp.ne.s32.totalorder %s135, %s137
      %p144 = scmp.eq.s32.totalorder %s22, 3
      %p145 = por %p143, %p144
      %p146 = scmp.ne.s32.totalorder %s137, %s138
      %p147 = scmp.eq.s32.totalorder %s22, 0
      %p148 = por %p146, %p147
      %p149 = scmp.ne.s32.totalorder %s137, %s138
      %p150 = scmp.eq.s32.totalorder %s23, 3
      %p151 = por %p149, %p150
      %p153 = scmp.ne.s32.totalorder %s138, %s152
      %p154 = scmp.eq.s32.totalorder %s23, 0
      %p155 = por %p153, %p154
      %s157 = sadd.s32 %s156, 1
      %p160 = scmp.eq.s32.totalorder %s17, 3
      %p161 = scmp.ne.s32.totalorder %s156, %s158
      %p162 = scmp.eq.s32.totalorder %s17, 0
      %p163 = por %p161, %p162
      %p164 = scmp.ne.s32.totalorder %s156, %s158
      %p165 = scmp.eq.s32.totalorder %s22, 3
      %p166 = por %p164, %p165
      %p167 = scmp.ne.s32.totalorder %s158, %s159
      %p168 = scmp.eq.s32.totalorder %s22, 0
      %p169 = por %p167, %p168
      %p170 = scmp.ne.s32.totalorder %s158, %s159
      %p171 = scmp.eq.s32.totalorder %s23, 3
      %p172 = por %p170, %p171
      %p174 = scmp.ne.s32.totalorder %s159, %s173
      %p175 = scmp.eq.s32.totalorder %s23, 0
      %p176 = por %p174, %p175
      %s178 = sadd.s32 %s177, 1
      %p181 = scmp.eq.s32.totalorder %s17, 3
      %p182 = scmp.ne.s32.totalorder %s177, %s179
      %p183 = scmp.eq.s32.totalorder %s17, 0
      %p184 = por %p182, %p183
      %p185 = scmp.ne.s32.totalorder %s177, %s179
      %p186 = scmp.eq.s32.totalorder %s22, 3
      %p187 = por %p185, %p186
      %p188 = scmp.ne.s32.totalorder %s179, %s180
      %p189 = scmp.eq.s32.totalorder %s22, 0
      %p190 = por %p188, %p189
      %p191 = scmp.ne.s32.totalorder %s179, %s180
      %p192 = scmp.eq.s32.totalorder %s23, 3
      %p193 = por %p191, %p192
      %p195 = scmp.ne.s32.totalorder %s180, %s194
      %p196 = scmp.eq.s32.totalorder %s23, 0
      %p197 = por %p195, %p196
      %s199 = sadd.s32 %s198, 1
      %p202 = scmp.eq.s32.totalorder %s17, 3
      %p203 = scmp.ne.s32.totalorder %s198, %s200
      %p204 = scmp.eq.s32.totalorder %s17, 0
      %p205 = por %p203, %p204
      %p206 = scmp.ne.s32.totalorder %s198, %s200
      %p207 = scmp.eq.s32.totalorder %s22, 3
      %p208 = por %p206, %p207
      %p209 = scmp.ne.s32.totalorder %s200, %s201
      %p210 = scmp.eq.s32.totalorder %s22, 0
      %p211 = por %p209, %p210
      %p212 = scmp.ne.s32.totalorder %s200, %s201
      %p213 = scmp.eq.s32.totalorder %s23, 3
      %p214 = por %p212, %p213
      %p216 = scmp.ne.s32.totalorder %s201, %s215
      %p217 = scmp.eq.s32.totalorder %s23, 0
      %p218 = por %p216, %p217
      %s219 = ssub.s32 %s24, %s36
      %s220 = ssub.s32 %s25, %s32
      %s221 = sor.u32 %s219, %s220
      %p222 = scmp.eq.s32.totalorder %s221, 0
      %s224 = sadd.s32 %s223, 1
      %s225 = scalar_select %p222, %s223, %s224
      %p228 = pneg %p222
      %p229 = scmp.eq.s32.totalorder %s17, 3
      %p230 = por %p228, %p229
      %p231 = scmp.ne.s32.totalorder %s223, %s226
      %p232 = scmp.eq.s32.totalorder %s17, 0
      %p233 = por %p231, %p232
      %p234 = scmp.ne.s32.totalorder %s223, %s226
      %p235 = scmp.eq.s32.totalorder %s22, 3
      %p236 = por %p234, %p235
      %p237 = scmp.ne.s32.totalorder %s226, %s227
      %p238 = scmp.eq.s32.totalorder %s22, 0
      %p239 = por %p237, %p238
      %p240 = scmp.ne.s32.totalorder %s226, %s227
      %p241 = scmp.eq.s32.totalorder %s23, 3
      %p242 = por %p240, %p241
      %p244 = scmp.ne.s32.totalorder %s227, %s243
      %p245 = scmp.eq.s32.totalorder %s23, 0
      %p246 = por %p244, %p245
      %p247 = scmp.le.s32.totalorder 1, %s17
      %p248 = scmp.lt.s32.totalorder %s17, 5
      %p249 = pnand %p247, %p248
      %p250 = pneg %p249
      // Predicated region
      $region9: #{tpu_custom_call.1} parent=5 // pred_check
        _
      $region10: #{tpu_custom_call.1} parent=5 // pred_check_branch
        %252 = sbr.rel (%p249) target = $region12
      $region11: #{tpu_custom_call.1} parent=5 // pred_region
        %s253 = ssub.s32 %s17, 1
        // Predicated region
        $region13: #{tpu_custom_call.1} parent=11 // pred_check
          %p254 = pneg %p106
        $region14: #{tpu_custom_call.1} parent=11 // pred_check_branch
          %256 = sbr.rel (%p254) target = $region16
        $region15: #{tpu_custom_call.1} parent=11 // pred_region
          _
        $region16: #{tpu_custom_call.1} parent=11 // pred_fallthru
          _
        // Predicated region
        $region17: #{tpu_custom_call.1} parent=11 // pred_check
          %p257 = pneg %p127
        $region18: #{tpu_custom_call.1} parent=11 // pred_check_branch
          %259 = sbr.rel (%p257) target = $region20
        $region19: #{tpu_custom_call.1} parent=11 // pred_region
          _
        $region20: #{tpu_custom_call.1} parent=11 // pred_fallthru
          _
        // Predicated region
        $region21: #{tpu_custom_call.1} parent=11 // pred_check
          %p260 = pneg %p148
        $region22: #{tpu_custom_call.1} parent=11 // pred_check_branch
          %262 = sbr.rel (%p260) target = $region24
        $region23: #{tpu_custom_call.1} parent=11 // pred_region
          _
        $region24: #{tpu_custom_call.1} parent=11 // pred_fallthru
          _
        // Predicated region
        $region25: #{tpu_custom_call.1} parent=11 // pred_check
          %p263 = pneg %p169
        $region26: #{tpu_custom_call.1} parent=11 // pred_check_branch
          %265 = sbr.rel (%p263) target = $region28
        $region27: #{tpu_custom_call.1} parent=11 // pred_region
          _
        $region28: #{tpu_custom_call.1} parent=11 // pred_fallthru
          _
        // Predicated region
        $region29: #{tpu_custom_call.1} parent=11 // pred_check
          %p266 = pneg %p190
        $region30: #{tpu_custom_call.1} parent=11 // pred_check_branch
          %268 = sbr.rel (%p266) target = $region32
        $region31: #{tpu_custom_call.1} parent=11 // pred_region
          _
        $region32: #{tpu_custom_call.1} parent=11 // pred_fallthru
          _
        // Predicated region
        $region33: #{tpu_custom_call.1} parent=11 // pred_check
          %p269 = pneg %p211
        $region34: #{tpu_custom_call.1} parent=11 // pred_check_branch
          %271 = sbr.rel (%p269) target = $region36
        $region35: #{tpu_custom_call.1} parent=11 // pred_region
          _
        $region36: #{tpu_custom_call.1} parent=11 // pred_fallthru
          _
      $region12: #{tpu_custom_call.1} parent=5 // pred_fallthru
        _
      %p272 = scmp.lt.s32.totalorder %s17, 4
      // Predicated region
      $region37: #{tpu_custom_call.1} parent=5 // pred_check
        %p273 = pneg %p272
      $region38: #{tpu_custom_call.1} parent=5 // pred_check_branch
        %275 = sbr.rel (%p273) target = $region40
      $region39: #{tpu_custom_call.1} parent=5 // pred_region
        // Predicated region
        $region41: #{tpu_custom_call.1} parent=39 // pred_check
          %p276 = pneg %p51
        $region42: #{tpu_custom_call.1} parent=39 // pred_check_branch
          %278 = sbr.rel (%p276) target = $region44
        $region43: #{tpu_custom_call.1} parent=39 // pred_region
          %s279 = sand.u32 %s41, 1
          %s280 = sand.u32 %s41, 1
          %s281 = smul.addr %s280, 16
          %s282 = scalar_lea.vmem [#allocation2], %s281
          %s283 = smul.addr %s24, 8
          %s284 = sadd.s32 %s25, %s283
          %s285 = smul.addr %s284, 4
          %s286 = scalar_lea.vmem %s0, %s285
          // Predicated region
          $region45: #{tpu_custom_call.1} parent=43 // pred_check
            _
          $region46: #{tpu_custom_call.1} parent=43 // pred_check_branch
            %288 = sbr.rel (0) target = $region48
          $region47: #{tpu_custom_call.1} parent=43 // pred_region
            // Predicated region
            $region49: #{tpu_custom_call.1} parent=47 // pred_check
              _
            $region50: #{tpu_custom_call.1} parent=47 // pred_check_branch
              %290 = sbr.rel target = $region52
            $region51: #{tpu_custom_call.1} parent=47 // pred_region
              // Predicated region
              $region64: #{tpu_custom_call.1} parent=51 // pred_check
                _
              $region65: #{tpu_custom_call.1} parent=51 // pred_check_branch
                %311 = sbr.rel (0) target = $region67
              $region66: #{tpu_custom_call.1} parent=51 // pred_region
                loop: start=0, step=1, limit=1
                $region68: #{tpu_custom_call.1} parent=66 // loop_pre_header
                  _
                $region69: #{tpu_custom_call.1} parent=66 // loop_header
                  %s313 = sphi 0, %s317
                  %p314 = scmp.ge.s32.totalorder %s313, 1
                  %s318 = sphi %s286, %s286
                  %s319 = sphi %s282, %s282
                $region70: #{tpu_custom_call.1} parent=66 // loop_header_branch
                  %316 = sbr.rel (%p314) target = $region74
                $region71: #{tpu_custom_call.1} parent=66 // loop_body
                  _
                $region72: #{tpu_custom_call.1} parent=66 // loop_footer
                  %s317 = sadd.s32 1, %s313
                $region73: #{tpu_custom_call.1} parent=66 // loop_footer_branch
                  %312 = sbr.rel target = $region69
                $region74: #{tpu_custom_call.1} parent=66 // loop_exit
                  _
                loop: start=0, step=1, limit=1
                $region75: #{tpu_custom_call.1} parent=66 // loop_pre_header
                  _
                $region76: #{tpu_custom_call.1} parent=66 // loop_header
                  %s322 = sphi 0, %s326
                  %p323 = scmp.ge.s32.totalorder %s322, 1
                  %s327 = sphi %s286, %s286
                  %s328 = sphi %s282, %s282
                $region77: #{tpu_custom_call.1} parent=66 // loop_header_branch
                  %325 = sbr.rel (%p323) target = $region81
                $region78: #{tpu_custom_call.1} parent=66 // loop_body
                  %v329 = vld [vmem:[%s327] sm:$0xf]
                  %330 = vst [vmem:[%s328] sm:$0xf] %v329
                  %v331 = vld [vmem:[%s327 + $0x8] sm:$0xf]
                  %332 = vst [vmem:[%s328 + $0x4] sm:$0xf] %v331
                  %v333 = vld [vmem:[%s327 + $0x10] sm:$0xf]
                  %334 = vst [vmem:[%s328 + $0x8] sm:$0xf] %v333
                  %v335 = vld [vmem:[%s327 + $0x18] sm:$0xf]
                  %336 = vst [vmem:[%s328 + $0xc] sm:$0xf] %v335
                $region79: #{tpu_custom_call.1} parent=66 // loop_footer
                  %s326 = sadd.s32 1, %s322
                $region80: #{tpu_custom_call.1} parent=66 // loop_footer_branch
                  %321 = sbr.rel target = $region76
                $region81: #{tpu_custom_call.1} parent=66 // loop_exit
                  _
              $region67: #{tpu_custom_call.1} parent=51 // pred_fallthru
                _
            $region52: #{tpu_custom_call.1} parent=47 // pred_fallthru
              _
            // Predicated region
            $region53: #{tpu_custom_call.1} parent=47 // pred_check
              _
            $region54: #{tpu_custom_call.1} parent=47 // pred_check_branch
              %292 = sbr.rel (0) target = $region56
            $region55: #{tpu_custom_call.1} parent=47 // pred_region
              loop: start=0, step=1, limit=1
              $region57: #{tpu_custom_call.1} parent=55 // loop_pre_header
                _
              $region58: #{tpu_custom_call.1} parent=55 // loop_header
                %s295 = sphi 0, %s299
                %p296 = scmp.ge.s32.totalorder %s295, 1
                %s300 = sphi %s286, %s286
                %s301 = sphi %s282, %s282
              $region59: #{tpu_custom_call.1} parent=55 // loop_header_branch
                %298 = sbr.rel (%p296) target = $region63
              $region60: #{tpu_custom_call.1} parent=55 // loop_body
                %v302 = vld [vmem:[%s300] sm:$0xf]
                %303 = vst [vmem:[%s301] sm:$0xf] %v302
                %v304 = vld [vmem:[%s300 + $0x8] sm:$0xf]
                %305 = vst [vmem:[%s301 + $0x4] sm:$0xf] %v304
                %v306 = vld [vmem:[%s300 + $0x10] sm:$0xf]
                %307 = vst [vmem:[%s301 + $0x8] sm:$0xf] %v306
                %v308 = vld [vmem:[%s300 + $0x18] sm:$0xf]
                %309 = vst [vmem:[%s301 + $0xc] sm:$0xf] %v308
              $region61: #{tpu_custom_call.1} parent=55 // loop_footer
                %s299 = sadd.s32 1, %s295
              $region62: #{tpu_custom_call.1} parent=55 // loop_footer_branch
                %294 = sbr.rel target = $region58
              $region63: #{tpu_custom_call.1} parent=55 // loop_exit
                _
            $region56: #{tpu_custom_call.1} parent=47 // pred_fallthru
              _
          $region48: #{tpu_custom_call.1} parent=43 // pred_fallthru
            _
          %337 = vnop
        $region44: #{tpu_custom_call.1} parent=39 // pred_fallthru
          _
        // Predicated region
        $region82: #{tpu_custom_call.1} parent=39 // pred_check
          %p338 = pneg %p79
        $region83: #{tpu_custom_call.1} parent=39 // pred_check_branch
          %340 = sbr.rel (%p338) target = $region85
        $region84: #{tpu_custom_call.1} parent=39 // pred_region
          %p341 = scmp.lt.s32.totalorder %s24, 1
          %s342 = scalar_select %p341, %s24, 1
          %p343 = scmp.lt.s32.totalorder %s25, 1
          %s344 = scalar_select %p343, %s25, 1
          %s345 = smul.addr %s344, 4
          %s346 = smul.addr %s342, 8
          %s347 = sadd.s32 %s345, %s346
          %s348 = smul.addr %s347, 4
          %s349 = scalar_lea.vmem %s1, %s348
        $region85: #{tpu_custom_call.1} parent=39 // pred_fallthru
          _
      $region40: #{tpu_custom_call.1} parent=5 // pred_fallthru
        _
      %p350 = scmp.le.s32.totalorder 1, %s17
      %p351 = scmp.lt.s32.totalorder %s17, 5
      %p352 = pnand %p350, %p351
      %p353 = pneg %p352
      // Predicated region
      $region86: #{tpu_custom_call.1} parent=5 // pred_check
        _
      $region87: #{tpu_custom_call.1} parent=5 // pred_check_branch
        %355 = sbr.rel (%p352) target = $region89
      $region88: #{tpu_custom_call.1} parent=5 // pred_region
        %s356 = ssub.s32 %s17, 1
        %s357 = sand.u32 %s44, 1
        %s358 = sand.u32 %s44, 1
        %s359 = smul.addr %s358, 16
        %s360 = scalar_lea.vmem [#allocation2], %s359
        // Predicated region
        $region90: #{tpu_custom_call.1} parent=88 // pred_check
          %p361 = pneg %p57
        $region91: #{tpu_custom_call.1} parent=88 // pred_check_branch
          %363 = sbr.rel (%p361) target = $region93
        $region92: #{tpu_custom_call.1} parent=88 // pred_region
          _
        $region93: #{tpu_custom_call.1} parent=88 // pred_fallthru
          _
        %s364 = sand.u32 %s44, 1
        %s365 = sand.u32 %s44, 1
        %s366 = smul.addr %s365, 16
        %s367 = scalar_lea.vmem [#allocation2], %s366
        %p368 = pneg %p57
        %p369 = pneg %p54
        %p370 = scmp.lt.s32.totalorder %s26, 1
        %s371 = scalar_select %p370, %s26, 1
        %p372 = scmp.lt.s32.totalorder %s27, 1
        %s373 = scalar_select %p372, %s27, 1
        %s374 = smul.addr %s373, 4
        %s375 = smul.addr %s371, 8
        %s376 = sadd.s32 %s374, %s375
        %s377 = smul.addr %s376, 4
        %s378 = scalar_lea.vmem %s1, %s377
        %p379 = pneg %p85
        %p380 = pneg %p82
        %p381 = pneg %p106
        %p382 = pneg %p103
        %p383 = pneg %p127
        %p384 = pneg %p124
        %p385 = pneg %p148
        %p386 = pneg %p145
        %p387 = pneg %p169
        %p388 = pneg %p166
        %p389 = pneg %p190
        %p390 = pneg %p187
        %p391 = pneg %p211
        %p392 = pneg %p208
        %p393 = pneg %p239
        %p394 = pneg %p236
        %s395 = sand.u32 %s226, 1
        %s396 = scalar_lea.sflag [#allocation4], %s395
        %s397 = sand.u32 %s226, 1
        %s398 = smul.addr %s397, 32
        %s399 = scalar_lea.vmem [#allocation3], %s398
        %p400 = scmp.lt.s32.totalorder %s26, 1
        %s401 = scalar_select %p400, %s26, 1
        %p402 = scmp.lt.s32.totalorder %s27, 1
        %s403 = scalar_select %p402, %s27, 1
        %s404 = smul.addr %s403, 4
        %s405 = smul.addr %s401, 8
        %s406 = sadd.s32 %s404, %s405
        %s407 = smul.addr %s406, 4
        %s408 = scalar_lea.vmem %s1, %s407
        %v410 = vld [vmem:[%s360] sm:$0xf]
        %v411 = vld [vmem:[%s360 + $0x4] sm:$0xf]
        %v412 = vld [vmem:[%s360 + $0x8] sm:$0xf]
        %v413 = vld [vmem:[%s360 + $0xc] sm:$0xf]
        %v414 = vld [vmem:[%s408] sm:$0xf]
        %v415 = vld [vmem:[%s408 + $0x4] sm:$0xf]
        %v416 = vld [vmem:[%s408 + $0x8] sm:$0xf]
        %v417 = vld [vmem:[%s408 + $0xc] sm:$0xf]
        %v418 = vld [vmem:[%s2] sm:$0xf]
        %v419 = vld [vmem:[%s3] sm:$0xff]
        %421 = vset.pattern.permute.xlu0 0
        %422 = vperm.xlu0 %421, %v419
        %v423 = vpop.permute.xlu0 %422
        %v429 = vunpack.c.l.b16 %v410
        %v430 = vunpack.c.l.b16 %v411
        %v431 = vunpack.c.l.b16 %v412
        %v432 = vunpack.c.l.b16 %v413
        %v433 = vpack.c.b16 %v430, %v429
        %v434 = vpack.c.b16 %v432, %v431
        %vm437 = vcmask 261120
        %v439 = vsel %vm437, %v418, 0
        %441 = vmatprep.subr.bf16.mxu0 0
        %442 = vmatpush1.bf16.msra.mxu0 %v433
        %443 = vmatprep.subr.bf16.mxu0 0
        %444 = vmatpush1.bf16.msra.mxu0 %v434
        %445 = vmatprep.subr.bf16.mxu0 0
        %446 = vmatpush1.bf16.msra.mxu0 0
        %447 = vmatprep.subr.bf16.mxu0 0
        %448 = vmatpush1.bf16.msra.mxu0 0
        %449 = vmatprep.subr.bf16.mxu0 0
        %450 = vmatpush1.bf16.msra.mxu0 0
        %451 = vmatprep.subr.bf16.mxu0 0
        %452 = vmatpush1.bf16.msra.mxu0 0
        %453 = vmatprep.subr.bf16.mxu0 0
        %454 = vmatpush1.bf16.msra.mxu0 0
        %455 = vmatprep.subr.bf16.mxu0 0
        %456 = vmatpush1.bf16.msra.mxu0 0
        %457 = vmatprep.subr.bf16.mxu0 0
        %458 = vmatpush1.bf16.msra.mxu0 0
        %459 = vmatprep.subr.bf16.mxu0 0
        %460 = vmatpush1.bf16.msra.mxu0 0
        %461 = vmatprep.subr.bf16.mxu0 0
        %462 = vmatpush1.bf16.msra.mxu0 0
        %463 = vmatprep.subr.bf16.mxu0 0
        %464 = vmatpush1.bf16.msra.mxu0 0
        %465 = vmatprep.subr.bf16.mxu0 0
        %466 = vmatpush1.bf16.msra.mxu0 0
        %467 = vmatprep.subr.bf16.mxu0 0
        %468 = vmatpush1.bf16.msra.mxu0 0
        %469 = vmatprep.subr.bf16.mxu0 0
        %470 = vmatpush1.bf16.msra.mxu0 0
        %471 = vmatprep.subr.bf16.mxu0 0
        %472 = vmatpush1.bf16.msra.mxu0 0
        %473 = vmatprep.mubr.bf16.mxu0 0
        %474 = vmatmul.mubr.bf16.gmra.mrb[0].mxu0 %v439
        %v475 = vpop.f32.mrb[0].mxu0
        %v476 = vadd.f32 %v423, %v475
        %v477 = vpop.f32.mrb[0].mxu0
        %v478 = vpop.f32.mrb[0].mxu0
        %v479 = vpop.f32.mrb[0].mxu0
        %480 = vdwg.mxu0
        %v481 = vmax.f32 %v476, 0.0
        %v486 = vunpack.c.l.b16 %v414
        %v487 = vunpack.c.l.b16 %v415
        %v488 = vunpack.c.l.b16 %v416
        %v489 = vunpack.c.l.b16 %v417
        %v490 = vpack.c.b16 %v487, %v486
        %v491 = vpack.c.b16 %v489, %v488
        %494 = vmatprep.subr.bf16.mxu0 0
        %495 = vmatpush1.bf16.msra.mxu0 %v490
        %496 = vmatprep.subr.bf16.mxu0 0
        %497 = vmatpush1.bf16.msra.mxu0 %v491
        %498 = vmatprep.subr.bf16.mxu0 0
        %499 = vmatpush1.bf16.msra.mxu0 0
        %500 = vmatprep.subr.bf16.mxu0 0
        %501 = vmatpush1.bf16.msra.mxu0 0
        %502 = vmatprep.subr.bf16.mxu0 0
        %503 = vmatpush1.bf16.msra.mxu0 0
        %504 = vmatprep.subr.bf16.mxu0 0
        %505 = vmatpush1.bf16.msra.mxu0 0
        %506 = vmatprep.subr.bf16.mxu0 0
        %507 = vmatpush1.bf16.msra.mxu0 0
        %508 = vmatprep.subr.bf16.mxu0 0
        %509 = vmatpush1.bf16.msra.mxu0 0
        %510 = vmatprep.subr.bf16.mxu0 0
        %511 = vmatpush1.bf16.msra.mxu0 0
        %512 = vmatprep.subr.bf16.mxu0 0
        %513 = vmatpush1.bf16.msra.mxu0 0
        %514 = vmatprep.subr.bf16.mxu0 0
        %515 = vmatpush1.bf16.msra.mxu0 0
        %516 = vmatprep.subr.bf16.mxu0 0
        %517 = vmatpush1.bf16.msra.mxu0 0
        %518 = vmatprep.subr.bf16.mxu0 0
        %519 = vmatpush1.bf16.msra.mxu0 0
        %520 = vmatprep.subr.bf16.mxu0 0
        %521 = vmatpush1.bf16.msra.mxu0 0
        %522 = vmatprep.subr.bf16.mxu0 0
        %523 = vmatpush1.bf16.msra.mxu0 0
        %524 = vmatprep.subr.bf16.mxu0 0
        %525 = vmatpush1.bf16.msra.mxu0 0
        %526 = vmatprep.mubr.bf16.mxu0 0
        %527 = vmatmul.mubr.bf16.gmra.mrb[0].mxu0 %v439
        %v528 = vpop.f32.mrb[0].mxu0
        %v529 = vadd.f32 %v423, %v528
        %v530 = vpop.f32.mrb[0].mxu0
        %v531 = vpop.f32.mrb[0].mxu0
        %v532 = vpop.f32.mrb[0].mxu0
        %533 = vdwg.mxu0
        %v534 = vmax.f32 %v529, 0.0
        %p535 = scmp.eq.s32.totalorder %s27, 0
        %s536 = scalar_select %p535, 1, 0
        %v537 = vstv %s536
        %vm538 = vcmp.eq.s32.totalorder %v537, 1
        %v539 = vsel %vm538, 0.0, %v534
        %p540 = scmp.eq.s32.totalorder %s27, 1
        %s541 = scalar_select %p540, 1, 0
        %v542 = vstv %s541
        %vm543 = vcmp.eq.s32.totalorder %v542, 1
        %v544 = vsel %vm543, 0.0, %v534
        %v545 = vlaneseq
        %v546 = vand.u32 %v545, 127
        %vm547 = vcmp.eq.s32.totalorder %v546, 0
        %548 = vrot.lane.b32.xlu0 %v481, 1
        %v549 = vpop.permute.xlu0 %548
        %551 = vset.pattern.permute.xlu0 0
        %552 = vperm.xlu0 %551, %v539
        %v553 = vpop.permute.xlu0 %552
        %v555 = vsel %vm547, %v553, %v549
        %vm556 = vcmp.eq.s32.totalorder %v546, 127
        %557 = vrot.lane.b32.xlu0 %v481, 127
        %v558 = vpop.permute.xlu0 %557
        %560 = vset.pattern.permute.xlu0 1
        %561 = vperm.xlu0 %560, %v544
        %v562 = vpop.permute.xlu0 %561
        %v564 = vsel %vm556, %v562, %v558
        %v565 = vld [vmem:[%s5] sm:$0xff]
        %v566 = vpack.c.bf16 %v481, %v555
        %v567 = vpack.c.bf16 %v564, %v564
        %v568 = vld [vmem:[%s4] sm:$0xf]
        %570 = vset.pattern.permute.xlu0 0
        %571 = vperm.xlu0 %570, %v565
        %v572 = vpop.permute.xlu0 %571
        %vm574 = vcmask 195584
        %v576 = vsel %vm574, %v568, 0
        %vm578 = vcmask 1043456
        %v580 = vsel %vm578, %v567, 0
        %582 = vmatprep.subr.bf16.mxu0 0
        %583 = vmatpush1.bf16.msra.mxu0 %v566
        %584 = vmatprep.subr.bf16.mxu0 0
        %585 = vmatpush1.bf16.msra.mxu0 %v580
        %586 = vmatprep.subr.bf16.mxu0 0
        %587 = vmatpush1.bf16.msra.mxu0 0
        %588 = vmatprep.subr.bf16.mxu0 0
        %589 = vmatpush1.bf16.msra.mxu0 0
        %590 = vmatprep.subr.bf16.mxu0 0
        %591 = vmatpush1.bf16.msra.mxu0 0
        %592 = vmatprep.subr.bf16.mxu0 0
        %593 = vmatpush1.bf16.msra.mxu0 0
        %594 = vmatprep.subr.bf16.mxu0 0
        %595 = vmatpush1.bf16.msra.mxu0 0
        %596 = vmatprep.subr.bf16.mxu0 0
        %597 = vmatpush1.bf16.msra.mxu0 0
        %598 = vmatprep.subr.bf16.mxu0 0
        %599 = vmatpush1.bf16.msra.mxu0 0
        %600 = vmatprep.subr.bf16.mxu0 0
        %601 = vmatpush1.bf16.msra.mxu0 0
        %602 = vmatprep.subr.bf16.mxu0 0
        %603 = vmatpush1.bf16.msra.mxu0 0
        %604 = vmatprep.subr.bf16.mxu0 0
        %605 = vmatpush1.bf16.msra.mxu0 0
        %606 = vmatprep.subr.bf16.mxu0 0
        %607 = vmatpush1.bf16.msra.mxu0 0
        %608 = vmatprep.subr.bf16.mxu0 0
        %609 = vmatpush1.bf16.msra.mxu0 0
        %610 = vmatprep.subr.bf16.mxu0 0
        %611 = vmatpush1.bf16.msra.mxu0 0
        %612 = vmatprep.subr.bf16.mxu0 0
        %613 = vmatpush1.bf16.msra.mxu0 0
        %614 = vmatprep.mubr.bf16.mxu0 0
        %615 = vmatmul.mubr.bf16.gmra.mrb[0].mxu0 %v576
        %v616 = vpop.f32.mrb[0].mxu0
        %v617 = vadd.f32 %v572, %v616
        %v618 = vpop.f32.mrb[0].mxu0
        %v619 = vpop.f32.mrb[0].mxu0
        %v620 = vpop.f32.mrb[0].mxu0
        %621 = vdwg.mxu0
        %v622 = vmax.f32 %v617, 0.0
        %v623 = vld [vmem:[%s6] sm:$0xf]
        %v624 = vld [vmem:[%s6 + $0x4] sm:$0xf]
        %v625 = vld [vmem:[%s6 + $0x8] sm:$0xf]
        %v626 = vld [vmem:[%s6 + $0xc] sm:$0xf]
        %v627 = vpack.c.bf16 %v622, %v622
        %v628 = vld [vmem:[%s7] sm:$0xff]
        %v629 = vld [vmem:[%s7 + $0x8] sm:$0xff]
        %v630 = vld [vmem:[%s7 + $0x10] sm:$0xff]
        %v631 = vld [vmem:[%s7 + $0x18] sm:$0xff]
        %633 = vset.pattern.permute.xlu0 0
        %634 = vperm.xlu0 %633, %v628
        %v635 = vpop.permute.xlu0 %634
        %638 = vset.pattern.permute.xlu0 0
        %639 = vperm.xlu0 %638, %v629
        %v640 = vpop.permute.xlu0 %639
        %643 = vset.pattern.permute.xlu0 0
        %644 = vperm.xlu0 %643, %v630
        %v645 = vpop.permute.xlu0 %644
        %648 = vset.pattern.permute.xlu0 0
        %649 = vperm.xlu0 %648, %v631
        %v650 = vpop.permute.xlu0 %649
        %v656 = vunpack.c.l.b16 %v623
        %v657 = vunpack.c.l.b16 %v624
        %v658 = vunpack.c.l.b16 %v625
        %v659 = vunpack.c.l.b16 %v626
        %v660 = vpack.c.b16 %v657, %v656
        %v661 = vpack.c.b16 %v659, %v658
        %vm662 = vcmask 64512
        %v664 = vsel %vm662, %v660, 0
        %v667 = vsel %vm662, %v661, 0
        %v670 = vsel %vm578, %v627, 0
        %672 = vmatprep.subr.bf16.mxu0 0
        %673 = vmatpush1.bf16.msra.mxu0 %v670
        %674 = vmatprep.subr.bf16.mxu0 0
        %675 = vmatpush1.bf16.msra.mxu0 0
        %676 = vmatprep.subr.bf16.mxu0 0
        %677 = vmatpush1.bf16.msra.mxu0 0
        %678 = vmatprep.subr.bf16.mxu0 0
        %679 = vmatpush1.bf16.msra.mxu0 0
        %680 = vmatprep.subr.bf16.mxu0 0
        %681 = vmatpush1.bf16.msra.mxu0 0
        %682 = vmatprep.subr.bf16.mxu0 0
        %683 = vmatpush1.bf16.msra.mxu0 0
        %684 = vmatprep.subr.bf16.mxu0 0
        %685 = vmatpush1.bf16.msra.mxu0 0
        %686 = vmatprep.subr.bf16.mxu0 0
        %687 = vmatpush1.bf16.msra.mxu0 0
        %688 = vmatprep.subr.bf16.mxu0 0
        %689 = vmatpush1.bf16.msra.mxu0 0
        %690 = vmatprep.subr.bf16.mxu0 0
        %691 = vmatpush1.bf16.msra.mxu0 0
        %692 = vmatprep.subr.bf16.mxu0 0
        %693 = vmatpush1.bf16.msra.mxu0 0
        %694 = vmatprep.subr.bf16.mxu0 0
        %695 = vmatpush1.bf16.msra.mxu0 0
        %696 = vmatprep.subr.bf16.mxu0 0
        %697 = vmatpush1.bf16.msra.mxu0 0
        %698 = vmatprep.subr.bf16.mxu0 0
        %699 = vmatpush1.bf16.msra.mxu0 0
        %700 = vmatprep.subr.bf16.mxu0 0
        %701 = vmatpush1.bf16.msra.mxu0 0
        %702 = vmatprep.subr.bf16.mxu0 0
        %703 = vmatpush1.bf16.msra.mxu0 0
        %704 = vmatprep.mubr.bf16.mxu0 0
        %705 = vmatmul.mubr.bf16.gmra.mrb[0].mxu0 %v664
        %v706 = vpop.f32.mrb[0].mxu0
        %v707 = vadd.f32 %v635, %v706
        %v708 = vpop.f32.mrb[0].mxu0
        %v709 = vpop.f32.mrb[0].mxu0
        %v710 = vadd.f32 %v640, %v709
        %v711 = vpop.f32.mrb[0].mxu0
        %712 = vmatprep.mubr.bf16.mxu0 0
        %713 = vmatmul.mubr.bf16.gmra.mrb[0].mxu0 %v667
        %v714 = vpop.f32.mrb[0].mxu0
        %v715 = vadd.f32 %v645, %v714
        %v716 = vpop.f32.mrb[0].mxu0
        %v717 = vpop.f32.mrb[0].mxu0
        %v718 = vadd.f32 %v650, %v717
        %v719 = vpop.f32.mrb[0].mxu0
        %720 = vdwg.mxu0
        %v721 = vunpack.c.l.bf16 %v410
        %v722 = vunpack.c.l.bf16 %v411
        %v723 = vunpack.c.l.bf16 %v412
        %v724 = vunpack.c.l.bf16 %v413
        %v725 = vadd.f32 %v707, %v721
        %v726 = vadd.f32 %v710, %v722
        %v727 = vadd.f32 %v715, %v723
        %v728 = vadd.f32 %v718, %v724
        %v729 = vmax.f32 %v725, 0.0
        %v730 = vmax.f32 %v726, 0.0
        %v731 = vmax.f32 %v727, 0.0
        %v732 = vmax.f32 %v728, 0.0
        %733 = vst [vmem:[%s399] sm:$0xff] %v729
        %734 = vst [vmem:[%s399 + $0x8] sm:$0xff] %v730
        %735 = vst [vmem:[%s399 + $0x10] sm:$0xff] %v731
        %736 = vst [vmem:[%s399 + $0x18] sm:$0xff] %v732
        %s737 = sand.u32 %s226, 1
        %s738 = scalar_lea.sflag [#allocation4], %s737
        %s739 = sand.u32 %s226, 1
        %s740 = smul.addr %s739, 32
        %s741 = scalar_lea.vmem [#allocation3], %s740
        // Predicated region
        $region94: #{tpu_custom_call.1} parent=88 // pred_check
          %p742 = pneg %p236
        $region95: #{tpu_custom_call.1} parent=88 // pred_check_branch
          %744 = sbr.rel (%p742) target = $region97
        $region96: #{tpu_custom_call.1} parent=88 // pred_region
          %s746 = ssub.s32 512, 512
          %747 = vsyncadd %s738, %s746
          %s748 = smul.addr %s26, 8
          %s749 = sadd.s32 %s27, %s748
          %s750 = smul.addr %s749, 128
          %s751 = scalar_lea.hbm %s8, %s750
          %s752 = sshll.u32 %s741, 4
          %s753 = int_to_ptr.vmem [resolvable:$true] %s752
          %758 = dma.vmem_to_hbm [thread:$0]  %s753, 512, %s751, %s738, 128, 256, 8
        $region97: #{tpu_custom_call.1} parent=88 // pred_fallthru
          _
      $region89: #{tpu_custom_call.1} parent=5 // pred_fallthru
        _
      %p759 = scmp.le.s32.totalorder 2, %s17
      // Predicated region
      $region98: #{tpu_custom_call.1} parent=5 // pred_check
        %p760 = pneg %p759
      $region99: #{tpu_custom_call.1} parent=5 // pred_check_branch
        %762 = sbr.rel (%p760) target = $region101
      $region100: #{tpu_custom_call.1} parent=5 // pred_region
        %s763 = ssub.s32 %s17, 2
        // Predicated region
        $region102: #{tpu_custom_call.1} parent=100 // pred_check
          %p764 = pneg %p242
        $region103: #{tpu_custom_call.1} parent=100 // pred_check_branch
          %766 = sbr.rel (%p764) target = $region105
        $region104: #{tpu_custom_call.1} parent=100 // pred_region
          %s767 = sand.u32 %s227, 1
          %s768 = scalar_lea.sflag [#allocation4], %s767
          %s769 = sand.u32 %s227, 1
          %s770 = smul.addr %s769, 32
          %s771 = scalar_lea.vmem [#allocation3], %s770
          %772 = dma.done %s768, 512
        $region105: #{tpu_custom_call.1} parent=100 // pred_fallthru
          _
      $region101: #{tpu_custom_call.1} parent=5 // pred_fallthru
        _
    $region6: #{tpu_custom_call.1} parent=1 // loop_footer
      %s21 = sadd.s32 1, %s17
    $region7: #{tpu_custom_call.1} parent=1 // loop_footer_branch
      %16 = sbr.rel target = $region3
    $region8: #{tpu_custom_call.1} parent=1 // loop_exit
      _
    %773 = vsyncpa [#allocation4], 1
    %s774 = scalar_lea.sflag [#allocation4], 1
    %775 = vsyncpa %s774, 1

// kernel: tpu_custom_call.1
$region0: #{tpu_custom_call.1}
  #allocation0 [shape = 'u32[]', space=smem, size = 0x4, offset = 0x4, fixed_abs, tag = 'smem constant byte address 0x4 - core index']
  #allocation1 [shape = 'u32[144,128]{1,0:T(1,128)}', space=vmem, size = 0x12000, scoped, tag = 'internal scratch']
  %s0 = inlined_call_operand.vmem [shape: bf16[2,32,256], index: 0, kind: input, shape index: {}]
  %s1 = inlined_call_operand.vmem [shape: bf16[2,2,32,2], index: 1, kind: input, shape index: {}]
  %s2 = inlined_call_operand.vmem [shape: bf16[8,32], index: 2, kind: input, shape index: {}]
  %s3 = inlined_call_operand.vmem [shape: f32[8,1], index: 3, kind: input, shape index: {}]
  %s4 = inlined_call_operand.vmem [shape: bf16[8,24], index: 4, kind: input, shape index: {}]
  %s5 = inlined_call_operand.vmem [shape: f32[8,1], index: 5, kind: input, shape index: {}]
  %s6 = inlined_call_operand.vmem [shape: bf16[32,8], index: 6, kind: input, shape index: {}]
  %s7 = inlined_call_operand.vmem [shape: f32[32,1], index: 7, kind: input, shape index: {}]
  %s8 = inlined_call_operand.hbm [shape: f32[2,32,256], index: 8, kind: output, shape index: {}]
  %s9 = sld [smem:[#allocation0]]
  $region106: #{tpu_custom_call.1} parent=0
    _
  %s11 = ssub.s32 1, %s9
  %s12 = scalar_select 0, %s11, %s9
  $region1: #{tpu_custom_call.1} parent=0
    #allocation2 [shape = 'u8[16384]{0}', space=vmem, size = 0x4000, scoped, tag = 'input window, operand 0']
    #allocation3 [shape = 'u8[32768]{0}', space=vmem, size = 0x8000, scoped, tag = 'output window, operand 0']
    #allocation4 [shape = 's32[2]{0}', space=sflag, size = 0x8, scoped, tag = 'scoped memory for tpu_custom_call.1']
    %13 = vsyncpa [#allocation4], 0
    %s14 = scalar_lea.sflag [#allocation4], 1
    %15 = vsyncpa %s14, 0
    loop: start=0, step=1, limit=6
    $region2: #{tpu_custom_call.1} parent=1 // loop_pre_header
      _
    $region3: #{tpu_custom_call.1} parent=1 // loop_header
      %s17 = sphi 0, %s21
      %p18 = scmp.ge.s32.totalorder %s17, 6
      %s24 = sphi 0, %s36
      %s25 = sphi 0, %s32
      %s26 = sphi 0, %s24
      %s27 = sphi 0, %s25
      %s28 = sphi 0, %s26
      %s29 = sphi 0, %s27
      %s41 = sphi 0, %s43
      %s44 = sphi 0, %s41
      %s45 = sphi 0, %s44
      %s61 = sphi 0, %s45
      %s69 = sphi 0, %s71
      %s72 = sphi 0, %s69
      %s73 = sphi 0, %s72
      %s89 = sphi 0, %s73
      %s93 = sphi 0, %s93
      %s95 = sphi 0, %s93
      %s96 = sphi 0, %s95
      %s110 = sphi 0, %s96
      %s114 = sphi 0, %s114
      %s116 = sphi 0, %s114
      %s117 = sphi 0, %s116
      %s131 = sphi 0, %s117
      %s135 = sphi 0, %s135
      %s137 = sphi 0, %s135
      %s138 = sphi 0, %s137
      %s152 = sphi 0, %s138
      %s156 = sphi 0, %s156
      %s158 = sphi 0, %s156
      %s159 = sphi 0, %s158
      %s173 = sphi 0, %s159
      %s177 = sphi 0, %s177
      %s179 = sphi 0, %s177
      %s180 = sphi 0, %s179
      %s194 = sphi 0, %s180
      %s198 = sphi 0, %s198
      %s200 = sphi 0, %s198
      %s201 = sphi 0, %s200
      %s215 = sphi 0, %s201
      %s223 = sphi 0, %s225
      %s226 = sphi 0, %s223
      %s227 = sphi 0, %s226
      %s243 = sphi 0, %s227
    $region4: #{tpu_custom_call.1} parent=1 // loop_header_branch
      %20 = sbr.rel (%p18) target = $region8
    $region5: #{tpu_custom_call.1} parent=1 // loop_body
      %s22 = ssub.s32 %s17, 1
      %s23 = ssub.s32 %s17, 2
      %s30 = sadd.s32 1, %s25
      %p31 = scmp.ge.s32.totalorder %s30, 2
      %s32 = scalar_select %p31, 0, %s30
      %s33 = sadd.s32 1, %s24
      %s34 = scalar_select %p31, %s33, %s24
      %p35 = scmp.ge.s32.totalorder %s34, 2
      %s36 = scalar_select %p35, 0, %s34
      %s37 = ssub.s32 %s24, %s36
      %s38 = ssub.s32 %s25, %s32
      %s39 = sor.u32 %s37, %s38
      %p40 = scmp.eq.s32.totalorder %s39, 0
      %s42 = sadd.s32 %s41, 1
      %s43 = scalar_select %p40, %s41, %s42
      %p46 = pneg %p40
      %p47 = scmp.eq.s32.totalorder %s17, 3
      %p48 = por %p46, %p47
      %p49 = scmp.ne.s32.totalorder %s41, %s44
      %p50 = scmp.eq.s32.totalorder %s17, 0
      %p51 = por %p49, %p50
      %p52 = scmp.ne.s32.totalorder %s41, %s44
      %p53 = scmp.eq.s32.totalorder %s22, 3
      %p54 = por %p52, %p53
      %p55 = scmp.ne.s32.totalorder %s44, %s45
      %p56 = scmp.eq.s32.totalorder %s22, 0
      %p57 = por %p55, %p56
      %p58 = scmp.ne.s32.totalorder %s44, %s45
      %p59 = scmp.eq.s32.totalorder %s23, 3
      %p60 = por %p58, %p59
      %p62 = scmp.ne.s32.totalorder %s45, %s61
      %p63 = scmp.eq.s32.totalorder %s23, 0
      %p64 = por %p62, %p63
      %s65 = ssub.s32 %s24, %s36
      %s66 = ssub.s32 %s25, %s32
      %s67 = sor.u32 %s65, %s66
      %p68 = scmp.eq.s32.totalorder %s67, 0
      %s70 = sadd.s32 %s69, 1
      %s71 = scalar_select %p68, %s69, %s70
      %p74 = pneg %p68
      %p75 = scmp.eq.s32.totalorder %s17, 3
      %p76 = por %p74, %p75
      %p77 = scmp.ne.s32.totalorder %s69, %s72
      %p78 = scmp.eq.s32.totalorder %s17, 0
      %p79 = por %p77, %p78
      %p80 = scmp.ne.s32.totalorder %s69, %s72
      %p81 = scmp.eq.s32.totalorder %s22, 3
      %p82 = por %p80, %p81
      %p83 = scmp.ne.s32.totalorder %s72, %s73
      %p84 = scmp.eq.s32.totalorder %s22, 0
      %p85 = por %p83, %p84
      %p86 = scmp.ne.s32.totalorder %s72, %s73
      %p87 = scmp.eq.s32.totalorder %s23, 3
      %p88 = por %p86, %p87
      %p90 = scmp.ne.s32.totalorder %s73, %s89
      %p91 = scmp.eq.s32.totalorder %s23, 0
      %p92 = por %p90, %p91
      %s94 = sadd.s32 %s93, 1
      %p97 = scmp.eq.s32.totalorder %s17, 3
      %p98 = scmp.ne.s32.totalorder %s93, %s95
      %p99 = scmp.eq.s32.totalorder %s17, 0
      %p100 = por %p98, %p99
      %p101 = scmp.ne.s32.totalorder %s93, %s95
      %p102 = scmp.eq.s32.totalorder %s22, 3
      %p103 = por %p101, %p102
      %p104 = scmp.ne.s32.totalorder %s95, %s96
      %p105 = scmp.eq.s32.totalorder %s22, 0
      %p106 = por %p104, %p105
      %p107 = scmp.ne.s32.totalorder %s95, %s96
      %p108 = scmp.eq.s32.totalorder %s23, 3
      %p109 = por %p107, %p108
      %p111 = scmp.ne.s32.totalorder %s96, %s110
      %p112 = scmp.eq.s32.totalorder %s23, 0
      %p113 = por %p111, %p112
      %s115 = sadd.s32 %s114, 1
      %p118 = scmp.eq.s32.totalorder %s17, 3
      %p119 = scmp.ne.s32.totalorder %s114, %s116
      %p120 = scmp.eq.s32.totalorder %s17, 0
      %p121 = por %p119, %p120
      %p122 = scmp.ne.s32.totalorder %s114, %s116
      %p123 = scmp.eq.s32.totalorder %s22, 3
      %p124 = por %p122, %p123
      %p125 = scmp.ne.s32.totalorder %s116, %s117
      %p126 = scmp.eq.s32.totalorder %s22, 0
      %p127 = por %p125, %p126
      %p128 = scmp.ne.s32.totalorder %s116, %s117
      %p129 = scmp.eq.s32.totalorder %s23, 3
      %p130 = por %p128, %p129
      %p132 = scmp.ne.s32.totalorder %s117, %s131
      %p133 = scmp.eq.s32.totalorder %s23, 0
      %p134 = por %p132, %p133
      %s136 = sadd.s32 %s135, 1
      %p139 = scmp.eq.s32.totalorder %s17, 3
      %p140 = scmp.ne.s32.totalorder %s135, %s137
      %p141 = scmp.eq.s32.totalorder %s17, 0
      %p142 = por %p140, %p141
      %p143 = scmp.ne.s32.totalorder %s135, %s137
      %p144 = scmp.eq.s32.totalorder %s22, 3
      %p145 = por %p143, %p144
      %p146 = scmp.ne.s32.totalorder %s137, %s138
      %p147 = scmp.eq.s32.totalorder %s22, 0
      %p148 = por %p146, %p147
      %p149 = scmp.ne.s32.totalorder %s137, %s138
      %p150 = scmp.eq.s32.totalorder %s23, 3
      %p151 = por %p149, %p150
      %p153 = scmp.ne.s32.totalorder %s138, %s152
      %p154 = scmp.eq.s32.totalorder %s23, 0
      %p155 = por %p153, %p154
      %s157 = sadd.s32 %s156, 1
      %p160 = scmp.eq.s32.totalorder %s17, 3
      %p161 = scmp.ne.s32.totalorder %s156, %s158
      %p162 = scmp.eq.s32.totalorder %s17, 0
      %p163 = por %p161, %p162
      %p164 = scmp.ne.s32.totalorder %s156, %s158
      %p165 = scmp.eq.s32.totalorder %s22, 3
      %p166 = por %p164, %p165
      %p167 = scmp.ne.s32.totalorder %s158, %s159
      %p168 = scmp.eq.s32.totalorder %s22, 0
      %p169 = por %p167, %p168
      %p170 = scmp.ne.s32.totalorder %s158, %s159
      %p171 = scmp.eq.s32.totalorder %s23, 3
      %p172 = por %p170, %p171
      %p174 = scmp.ne.s32.totalorder %s159, %s173
      %p175 = scmp.eq.s32.totalorder %s23, 0
      %p176 = por %p174, %p175
      %s178 = sadd.s32 %s177, 1
      %p181 = scmp.eq.s32.totalorder %s17, 3
      %p182 = scmp.ne.s32.totalorder %s177, %s179
      %p183 = scmp.eq.s32.totalorder %s17, 0
      %p184 = por %p182, %p183
      %p185 = scmp.ne.s32.totalorder %s177, %s179
      %p186 = scmp.eq.s32.totalorder %s22, 3
      %p187 = por %p185, %p186
      %p188 = scmp.ne.s32.totalorder %s179, %s180
      %p189 = scmp.eq.s32.totalorder %s22, 0
      %p190 = por %p188, %p189
      %p191 = scmp.ne.s32.totalorder %s179, %s180
      %p192 = scmp.eq.s32.totalorder %s23, 3
      %p193 = por %p191, %p192
      %p195 = scmp.ne.s32.totalorder %s180, %s194
      %p196 = scmp.eq.s32.totalorder %s23, 0
      %p197 = por %p195, %p196
      %s199 = sadd.s32 %s198, 1
      %p202 = scmp.eq.s32.totalorder %s17, 3
      %p203 = scmp.ne.s32.totalorder %s198, %s200
      %p204 = scmp.eq.s32.totalorder %s17, 0
      %p205 = por %p203, %p204
      %p206 = scmp.ne.s32.totalorder %s198, %s200
      %p207 = scmp.eq.s32.totalorder %s22, 3
      %p208 = por %p206, %p207
      %p209 = scmp.ne.s32.totalorder %s200, %s201
      %p210 = scmp.eq.s32.totalorder %s22, 0
      %p211 = por %p209, %p210
      %p212 = scmp.ne.s32.totalorder %s200, %s201
      %p213 = scmp.eq.s32.totalorder %s23, 3
      %p214 = por %p212, %p213
      %p216 = scmp.ne.s32.totalorder %s201, %s215
      %p217 = scmp.eq.s32.totalorder %s23, 0
      %p218 = por %p216, %p217
      %s219 = ssub.s32 %s24, %s36
      %s220 = ssub.s32 %s25, %s32
      %s221 = sor.u32 %s219, %s220
      %p222 = scmp.eq.s32.totalorder %s221, 0
      %s224 = sadd.s32 %s223, 1
      %s225 = scalar_select %p222, %s223, %s224
      %p228 = pneg %p222
      %p229 = scmp.eq.s32.totalorder %s17, 3
      %p230 = por %p228, %p229
      %p231 = scmp.ne.s32.totalorder %s223, %s226
      %p232 = scmp.eq.s32.totalorder %s17, 0
      %p233 = por %p231, %p232
      %p234 = scmp.ne.s32.totalorder %s223, %s226
      %p235 = scmp.eq.s32.totalorder %s22, 3
      %p236 = por %p234, %p235
      %p237 = scmp.ne.s32.totalorder %s226, %s227
      %p238 = scmp.eq.s32.totalorder %s22, 0
      %p239 = por %p237, %p238
      %p240 = scmp.ne.s32.totalorder %s226, %s227
      %p241 = scmp.eq.s32.totalorder %s23, 3
      %p242 = por %p240, %p241
      %p244 = scmp.ne.s32.totalorder %s227, %s243
      %p245 = scmp.eq.s32.totalorder %s23, 0
      %p246 = por %p244, %p245
      %p247 = scmp.le.s32.totalorder 1, %s17
      %p248 = scmp.lt.s32.totalorder %s17, 5
      %p249 = pnand %p247, %p248
      %p250 = pneg %p249
      // Predicated region
      $region9: #{tpu_custom_call.1} parent=5 // pred_check
        _
      $region10: #{tpu_custom_call.1} parent=5 // pred_check_branch
        %252 = sbr.rel (%p249) target = $region12
      $region11: #{tpu_custom_call.1} parent=5 // pred_region
        %s253 = ssub.s32 %s17, 1
        // Predicated region
        $region13: #{tpu_custom_call.1} parent=11 // pred_check
          %p254 = pneg %p106
        $region14: #{tpu_custom_call.1} parent=11 // pred_check_branch
          %256 = sbr.rel (%p254) target = $region16
        $region15: #{tpu_custom_call.1} parent=11 // pred_region
          _
        $region16: #{tpu_custom_call.1} parent=11 // pred_fallthru
          _
        // Predicated region
        $region17: #{tpu_custom_call.1} parent=11 // pred_check
          %p257 = pneg %p127
        $region18: #{tpu_custom_call.1} parent=11 // pred_check_branch
          %259 = sbr.rel (%p257) target = $region20
        $region19: #{tpu_custom_call.1} parent=11 // pred_region
          _
        $region20: #{tpu_custom_call.1} parent=11 // pred_fallthru
          _
        // Predicated region
        $region21: #{tpu_custom_call.1} parent=11 // pred_check
          %p260 = pneg %p148
        $region22: #{tpu_custom_call.1} parent=11 // pred_check_branch
          %262 = sbr.rel (%p260) target = $region24
        $region23: #{tpu_custom_call.1} parent=11 // pred_region
          _
        $region24: #{tpu_custom_call.1} parent=11 // pred_fallthru
          _
        // Predicated region
        $region25: #{tpu_custom_call.1} parent=11 // pred_check
          %p263 = pneg %p169
        $region26: #{tpu_custom_call.1} parent=11 // pred_check_branch
          %265 = sbr.rel (%p263) target = $region28
        $region27: #{tpu_custom_call.1} parent=11 // pred_region
          _
        $region28: #{tpu_custom_call.1} parent=11 // pred_fallthru
          _
        // Predicated region
        $region29: #{tpu_custom_call.1} parent=11 // pred_check
          %p266 = pneg %p190
        $region30: #{tpu_custom_call.1} parent=11 // pred_check_branch
          %268 = sbr.rel (%p266) target = $region32
        $region31: #{tpu_custom_call.1} parent=11 // pred_region
          _
        $region32: #{tpu_custom_call.1} parent=11 // pred_fallthru
          _
        // Predicated region
        $region33: #{tpu_custom_call.1} parent=11 // pred_check
          %p269 = pneg %p211
        $region34: #{tpu_custom_call.1} parent=11 // pred_check_branch
          %271 = sbr.rel (%p269) target = $region36
        $region35: #{tpu_custom_call.1} parent=11 // pred_region
          _
        $region36: #{tpu_custom_call.1} parent=11 // pred_fallthru
          _
      $region12: #{tpu_custom_call.1} parent=5 // pred_fallthru
        _
      %p272 = scmp.lt.s32.totalorder %s17, 4
      // Predicated region
      $region37: #{tpu_custom_call.1} parent=5 // pred_check
        %p273 = pneg %p272
      $region38: #{tpu_custom_call.1} parent=5 // pred_check_branch
        %275 = sbr.rel (%p273) target = $region40
      $region39: #{tpu_custom_call.1} parent=5 // pred_region
        // Predicated region
        $region41: #{tpu_custom_call.1} parent=39 // pred_check
          %p276 = pneg %p51
        $region42: #{tpu_custom_call.1} parent=39 // pred_check_branch
          %278 = sbr.rel (%p276) target = $region44
        $region43: #{tpu_custom_call.1} parent=39 // pred_region
          %s279 = sand.u32 %s41, 1
          %s280 = sand.u32 %s41, 1
          %s281 = smul.addr %s280, 16
          %s282 = scalar_lea.vmem [#allocation2], %s281
          %s283 = smul.addr %s24, 8
          %s284 = sadd.s32 %s25, %s283
          %s285 = smul.addr %s284, 4
          %s286 = scalar_lea.vmem %s0, %s285
          // Predicated region
          $region45: #{tpu_custom_call.1} parent=43 // pred_check
            _
          $region46: #{tpu_custom_call.1} parent=43 // pred_check_branch
            %288 = sbr.rel (0) target = $region48
          $region47: #{tpu_custom_call.1} parent=43 // pred_region
            // Predicated region
            $region49: #{tpu_custom_call.1} parent=47 // pred_check
              _
            $region50: #{tpu_custom_call.1} parent=47 // pred_check_branch
              %290 = sbr.rel target = $region52
            $region51: #{tpu_custom_call.1} parent=47 // pred_region
              // Predicated region
              $region64: #{tpu_custom_call.1} parent=51 // pred_check
                _
              $region65: #{tpu_custom_call.1} parent=51 // pred_check_branch
                %311 = sbr.rel (0) target = $region67
              $region66: #{tpu_custom_call.1} parent=51 // pred_region
                loop: start=0, step=1, limit=1
                $region68: #{tpu_custom_call.1} parent=66 // loop_pre_header
                  _
                $region69: #{tpu_custom_call.1} parent=66 // loop_header
                  %s313 = sphi 0, %s317
                  %p314 = scmp.ge.s32.totalorder %s313, 1
                  %s318 = sphi %s286, %s286
                  %s319 = sphi %s282, %s282
                $region70: #{tpu_custom_call.1} parent=66 // loop_header_branch
                  %316 = sbr.rel (%p314) target = $region74
                $region71: #{tpu_custom_call.1} parent=66 // loop_body
                  _
                $region72: #{tpu_custom_call.1} parent=66 // loop_footer
                  %s317 = sadd.s32 1, %s313
                $region73: #{tpu_custom_call.1} parent=66 // loop_footer_branch
                  %312 = sbr.rel target = $region69
                $region74: #{tpu_custom_call.1} parent=66 // loop_exit
                  _
                loop: start=0, step=1, limit=1
                $region75: #{tpu_custom_call.1} parent=66 // loop_pre_header
                  _
                $region76: #{tpu_custom_call.1} parent=66 // loop_header
                  %s322 = sphi 0, %s326
                  %p323 = scmp.ge.s32.totalorder %s322, 1
                  %s327 = sphi %s286, %s286
                  %s328 = sphi %s282, %s282
                $region77: #{tpu_custom_call.1} parent=66 // loop_header_branch
                  %325 = sbr.rel (%p323) target = $region81
                $region78: #{tpu_custom_call.1} parent=66 // loop_body
                  %v329 = vld [vmem:[%s327] sm:$0xf]
                  %330 = vst [vmem:[%s328] sm:$0xf] %v329
                  %v331 = vld [vmem:[%s327 + $0x8] sm:$0xf]
                  %332 = vst [vmem:[%s328 + $0x4] sm:$0xf] %v331
                  %v333 = vld [vmem:[%s327 + $0x10] sm:$0xf]
                  %334 = vst [vmem:[%s328 + $0x8] sm:$0xf] %v333
                  %v335 = vld [vmem:[%s327 + $0x18] sm:$0xf]
                  %336 = vst [vmem:[%s328 + $0xc] sm:$0xf] %v335
                $region79: #{tpu_custom_call.1} parent=66 // loop_footer
                  %s326 = sadd.s32 1, %s322
                $region80: #{tpu_custom_call.1} parent=66 // loop_footer_branch
                  %321 = sbr.rel target = $region76
                $region81: #{tpu_custom_call.1} parent=66 // loop_exit
                  _
              $region67: #{tpu_custom_call.1} parent=51 // pred_fallthru
                _
            $region52: #{tpu_custom_call.1} parent=47 // pred_fallthru
              _
            // Predicated region
            $region53: #{tpu_custom_call.1} parent=47 // pred_check
              _
            $region54: #{tpu_custom_call.1} parent=47 // pred_check_branch
              %292 = sbr.rel (0) target = $region56
            $region55: #{tpu_custom_call.1} parent=47 // pred_region
              loop: start=0, step=1, limit=1
              $region57: #{tpu_custom_call.1} parent=55 // loop_pre_header
                _
              $region58: #{tpu_custom_call.1} parent=55 // loop_header
                %s295 = sphi 0, %s299
                %p296 = scmp.ge.s32.totalorder %s295, 1
                %s300 = sphi %s286, %s286
                %s301 = sphi %s282, %s282
              $region59: #{tpu_custom_call.1} parent=55 // loop_header_branch
                %298 = sbr.rel (%p296) target = $region63
              $region60: #{tpu_custom_call.1} parent=55 // loop_body
                %v302 = vld [vmem:[%s300] sm:$0xf]
                %303 = vst [vmem:[%s301] sm:$0xf] %v302
                %v304 = vld [vmem:[%s300 + $0x8] sm:$0xf]
                %305 = vst [vmem:[%s301 + $0x4] sm:$0xf] %v304
                %v306 = vld [vmem:[%s300 + $0x10] sm:$0xf]
                %307 = vst [vmem:[%s301 + $0x8] sm:$0xf] %v306
                %v308 = vld [vmem:[%s300 + $0x18] sm:$0xf]
                %309 = vst [vmem:[%s301 + $0xc] sm:$0xf] %v308
              $region61: #{tpu_custom_call.1} parent=55 // loop_footer
                %s299 = sadd.s32 1, %s295
              $region62: #{tpu_custom_call.1} parent=55 // loop_footer_branch
                %294 = sbr.rel target = $region58
              $region63: #{tpu_custom_call.1} parent=55 // loop_exit
                _
            $region56: #{tpu_custom_call.1} parent=47 // pred_fallthru
              _
          $region48: #{tpu_custom_call.1} parent=43 // pred_fallthru
            _
          %337 = vnop
        $region44: #{tpu_custom_call.1} parent=39 // pred_fallthru
          _
        // Predicated region
        $region82: #{tpu_custom_call.1} parent=39 // pred_check
          %p338 = pneg %p79
        $region83: #{tpu_custom_call.1} parent=39 // pred_check_branch
          %340 = sbr.rel (%p338) target = $region85
        $region84: #{tpu_custom_call.1} parent=39 // pred_region
          %p341 = scmp.lt.s32.totalorder %s24, 1
          %s342 = scalar_select %p341, %s24, 1
          %p343 = scmp.lt.s32.totalorder %s25, 1
          %s344 = scalar_select %p343, %s25, 1
          %s345 = smul.addr %s344, 4
          %s346 = smul.addr %s342, 8
          %s347 = sadd.s32 %s345, %s346
          %s348 = smul.addr %s347, 4
          %s349 = scalar_lea.vmem %s1, %s348
        $region85: #{tpu_custom_call.1} parent=39 // pred_fallthru
          _
      $region40: #{tpu_custom_call.1} parent=5 // pred_fallthru
        _
      %p350 = scmp.le.s32.totalorder 1, %s17
      %p351 = scmp.lt.s32.totalorder %s17, 5
      %p352 = pnand %p350, %p351
      %p353 = pneg %p352
      // Predicated region
      $region86: #{tpu_custom_call.1} parent=5 // pred_check
        _
      $region87: #{tpu_custom_call.1} parent=5 // pred_check_branch
        %355 = sbr.rel (%p352) target = $region89
      $region88: #{tpu_custom_call.1} parent=5 // pred_region
        %s356 = ssub.s32 %s17, 1
        %s357 = sand.u32 %s44, 1
        %s358 = sand.u32 %s44, 1
        %s359 = smul.addr %s358, 16
        %s360 = scalar_lea.vmem [#allocation2], %s359
        // Predicated region
        $region90: #{tpu_custom_call.1} parent=88 // pred_check
          %p361 = pneg %p57
        $region91: #{tpu_custom_call.1} parent=88 // pred_check_branch
          %363 = sbr.rel (%p361) target = $region93
        $region92: #{tpu_custom_call.1} parent=88 // pred_region
          _
        $region93: #{tpu_custom_call.1} parent=88 // pred_fallthru
          _
        %s364 = sand.u32 %s44, 1
        %s365 = sand.u32 %s44, 1
        %s366 = smul.addr %s365, 16
        %s367 = scalar_lea.vmem [#allocation2], %s366
        %p368 = pneg %p57
        %p369 = pneg %p54
        %p370 = scmp.lt.s32.totalorder %s26, 1
        %s371 = scalar_select %p370, %s26, 1
        %p372 = scmp.lt.s32.totalorder %s27, 1
        %s373 = scalar_select %p372, %s27, 1
        %s374 = smul.addr %s373, 4
        %s375 = smul.addr %s371, 8
        %s376 = sadd.s32 %s374, %s375
        %s377 = smul.addr %s376, 4
        %s378 = scalar_lea.vmem %s1, %s377
        %p379 = pneg %p85
        %p380 = pneg %p82
        %p381 = pneg %p106
        %p382 = pneg %p103
        %p383 = pneg %p127
        %p384 = pneg %p124
        %p385 = pneg %p148
        %p386 = pneg %p145
        %p387 = pneg %p169
        %p388 = pneg %p166
        %p389 = pneg %p190
        %p390 = pneg %p187
        %p391 = pneg %p211
        %p392 = pneg %p208
        %p393 = pneg %p239
        %p394 = pneg %p236
        %s395 = sand.u32 %s226, 1
        %s396 = scalar_lea.sflag [#allocation4], %s395
        %s397 = sand.u32 %s226, 1
        %s398 = smul.addr %s397, 32
        %s399 = scalar_lea.vmem [#allocation3], %s398
        %p400 = scmp.lt.s32.totalorder %s26, 1
        %s401 = scalar_select %p400, %s26, 1
        %p402 = scmp.lt.s32.totalorder %s27, 1
        %s403 = scalar_select %p402, %s27, 1
        %s404 = smul.addr %s403, 4
        %s405 = smul.addr %s401, 8
        %s406 = sadd.s32 %s404, %s405
        %s407 = smul.addr %s406, 4
        %s408 = scalar_lea.vmem %s1, %s407
        %v410 = vld [vmem:[%s360] sm:$0xf]
        %v411 = vld [vmem:[%s360 + $0x4] sm:$0xf]
        %v412 = vld [vmem:[%s360 + $0x8] sm:$0xf]
        %v413 = vld [vmem:[%s360 + $0xc] sm:$0xf]
        %v414 = vld [vmem:[%s408] sm:$0xf]
        %v415 = vld [vmem:[%s408 + $0x4] sm:$0xf]
        %v416 = vld [vmem:[%s408 + $0x8] sm:$0xf]
        %v417 = vld [vmem:[%s408 + $0xc] sm:$0xf]
        %v418 = vld [vmem:[%s2] sm:$0xf]
        %v419 = vld [vmem:[%s3] sm:$0xff]
        %421 = vset.pattern.permute.xlu0 0
        %422 = vperm.xlu0 %421, %v419
        %v423 = vpop.permute.xlu0 %422
        %v429 = vunpack.c.l.b16 %v410
        %v430 = vunpack.c.l.b16 %v411
        %v431 = vunpack.c.l.b16 %v412
        %v432 = vunpack.c.l.b16 %v413
        %v433 = vpack.c.b16 %v430, %v429
        %v434 = vpack.c.b16 %v432, %v431
        %vm437 = vcmask 261120
        %v439 = vsel %vm437, %v418, 0
        %441 = vmatprep.subr.bf16.mxu0 0
        %442 = vmatpush1.bf16.msra.mxu0 %v433
        %443 = vmatprep.subr.bf16.mxu0 0
        %444 = vmatpush1.bf16.msra.mxu0 %v434
        %445 = vmatprep.subr.bf16.mxu0 0
        %446 = vmatpush1.bf16.msra.mxu0 0
        %447 = vmatprep.subr.bf16.mxu0 0
        %448 = vmatpush1.bf16.msra.mxu0 0
        %449 = vmatprep.subr.bf16.mxu0 0
        %450 = vmatpush1.bf16.msra.mxu0 0
        %451 = vmatprep.subr.bf16.mxu0 0
        %452 = vmatpush1.bf16.msra.mxu0 0
        %453 = vmatprep.subr.bf16.mxu0 0
        %454 = vmatpush1.bf16.msra.mxu0 0
        %455 = vmatprep.subr.bf16.mxu0 0
        %456 = vmatpush1.bf16.msra.mxu0 0
        %457 = vmatprep.subr.bf16.mxu0 0
        %458 = vmatpush1.bf16.msra.mxu0 0
        %459 = vmatprep.subr.bf16.mxu0 0
        %460 = vmatpush1.bf16.msra.mxu0 0
        %461 = vmatprep.subr.bf16.mxu0 0
        %462 = vmatpush1.bf16.msra.mxu0 0
        %463 = vmatprep.subr.bf16.mxu0 0
        %464 = vmatpush1.bf16.msra.mxu0 0
        %465 = vmatprep.subr.bf16.mxu0 0
        %466 = vmatpush1.bf16.msra.mxu0 0
        %467 = vmatprep.subr.bf16.mxu0 0
        %468 = vmatpush1.bf16.msra.mxu0 0
        %469 = vmatprep.subr.bf16.mxu0 0
        %470 = vmatpush1.bf16.msra.mxu0 0
        %471 = vmatprep.subr.bf16.mxu0 0
        %472 = vmatpush1.bf16.msra.mxu0 0
        %473 = vmatprep.mubr.bf16.mxu0 0
        %474 = vmatmul.mubr.bf16.gmra.mrb[0].mxu0 %v439
        %v475 = vpop.f32.mrb[0].mxu0
        %v476 = vadd.f32 %v423, %v475
        %v477 = vpop.f32.mrb[0].mxu0
        %v478 = vpop.f32.mrb[0].mxu0
        %v479 = vpop.f32.mrb[0].mxu0
        %480 = vdwg.mxu0
        %v481 = vmax.f32 %v476, 0.0
        %v486 = vunpack.c.l.b16 %v414
        %v487 = vunpack.c.l.b16 %v415
        %v488 = vunpack.c.l.b16 %v416
        %v489 = vunpack.c.l.b16 %v417
        %v490 = vpack.c.b16 %v487, %v486
        %v491 = vpack.c.b16 %v489, %v488
        %494 = vmatprep.subr.bf16.mxu0 0
        %495 = vmatpush1.bf16.msra.mxu0 %v490
        %496 = vmatprep.subr.bf16.mxu0 0
        %497 = vmatpush1.bf16.msra.mxu0 %v491
        %498 = vmatprep.subr.bf16.mxu0 0
        %499 = vmatpush1.bf16.msra.mxu0 0
        %500 = vmatprep.subr.bf16.mxu0 0
        %501 = vmatpush1.bf16.msra.mxu0 0
        %502 = vmatprep.subr.bf16.mxu0 0
        %503 = vmatpush1.bf16.msra.mxu0 0
        %504 = vmatprep.subr.bf16.mxu0 0
        %505 = vmatpush1.bf16.msra.mxu0 0
        %506 = vmatprep.subr.bf16.mxu0 0
        %507 = vmatpush1.bf16.msra.mxu0 0
        %508 = vmatprep.subr.bf16.mxu0 0
        %509 = vmatpush1.bf16.msra.mxu0 0
        %510 = vmatprep.subr.bf16.mxu0 0
        %511 = vmatpush1.bf16.msra.mxu0 0
        %512 = vmatprep.subr.bf16.mxu0 0
        %513 = vmatpush1.bf16.msra.mxu0 0
        %514 = vmatprep.subr.bf16.mxu0 0
        %515 = vmatpush1.bf16.msra.mxu0 0
        %516 = vmatprep.subr.bf16.mxu0 0
        %517 = vmatpush1.bf16.msra.mxu0 0
        %518 = vmatprep.subr.bf16.mxu0 0
        %519 = vmatpush1.bf16.msra.mxu0 0
        %520 = vmatprep.subr.bf16.mxu0 0
        %521 = vmatpush1.bf16.msra.mxu0 0
        %522 = vmatprep.subr.bf16.mxu0 0
        %523 = vmatpush1.bf16.msra.mxu0 0
        %524 = vmatprep.subr.bf16.mxu0 0
        %525 = vmatpush1.bf16.msra.mxu0 0
        %526 = vmatprep.mubr.bf16.mxu0 0
        %527 = vmatmul.mubr.bf16.gmra.mrb[0].mxu0 %v439
        %v528 = vpop.f32.mrb[0].mxu0
        %v529 = vadd.f32 %v423, %v528
        %v530 = vpop.f32.mrb[0].mxu0
        %v531 = vpop.f32.mrb[0].mxu0
        %v532 = vpop.f32.mrb[0].mxu0
        %533 = vdwg.mxu0
        %v534 = vmax.f32 %v529, 0.0
        %p535 = scmp.eq.s32.totalorder %s27, 0
        %s536 = scalar_select %p535, 1, 0
        %v537 = vstv %s536
        %vm538 = vcmp.eq.s32.totalorder %v537, 1
        %v539 = vsel %vm538, 0.0, %v534
        %p540 = scmp.eq.s32.totalorder %s27, 1
        %s541 = scalar_select %p540, 1, 0
        %v542 = vstv %s541
        %vm543 = vcmp.eq.s32.totalorder %v542, 1
        %v544 = vsel %vm543, 0.0, %v534
        %v545 = vlaneseq
        %v546 = vand.u32 %v545, 127
        %vm547 = vcmp.eq.s32.totalorder %v546, 0
        %548 = vrot.lane.b32.xlu0 %v481, 1
        %v549 = vpop.permute.xlu0 %548
        %551 = vset.pattern.permute.xlu0 0
        %552 = vperm.xlu0 %551, %v539
        %v553 = vpop.permute.xlu0 %552
        %v555 = vsel %vm547, %v553, %v549
        %vm556 = vcmp.eq.s32.totalorder %v546, 127
        %557 = vrot.lane.b32.xlu0 %v481, 127
        %v558 = vpop.permute.xlu0 %557
        %560 = vset.pattern.permute.xlu0 1
        %561 = vperm.xlu0 %560, %v544
        %v562 = vpop.permute.xlu0 %561
        %v564 = vsel %vm556, %v562, %v558
        %v565 = vld [vmem:[%s5] sm:$0xff]
        %v566 = vpack.c.bf16 %v481, %v555
        %v567 = vpack.c.bf16 %v564, %v564
        %v568 = vld [vmem:[%s4] sm:$0xf]
        %570 = vset.pattern.permute.xlu0 0
        %571 = vperm.xlu0 %570, %v565
        %v572 = vpop.permute.xlu0 %571
        %vm574 = vcmask 195584
        %v576 = vsel %vm574, %v568, 0
        %vm578 = vcmask 1043456
        %v580 = vsel %vm578, %v567, 0
        %582 = vmatprep.subr.bf16.mxu0 0
        %583 = vmatpush1.bf16.msra.mxu0 %v566
        %584 = vmatprep.subr.bf16.mxu0 0
        %585 = vmatpush1.bf16.msra.mxu0 %v580
        %586 = vmatprep.subr.bf16.mxu0 0
        %587 = vmatpush1.bf16.msra.mxu0 0
        %588 = vmatprep.subr.bf16.mxu0 0
        %589 = vmatpush1.bf16.msra.mxu0 0
        %590 = vmatprep.subr.bf16.mxu0 0
        %591 = vmatpush1.bf16.msra.mxu0 0
        %592 = vmatprep.subr.bf16.mxu0 0
        %593 = vmatpush1.bf16.msra.mxu0 0
        %594 = vmatprep.subr.bf16.mxu0 0
        %595 = vmatpush1.bf16.msra.mxu0 0
        %596 = vmatprep.subr.bf16.mxu0 0
        %597 = vmatpush1.bf16.msra.mxu0 0
        %598 = vmatprep.subr.bf16.mxu0 0
        %599 = vmatpush1.bf16.msra.mxu0 0
        %600 = vmatprep.subr.bf16.mxu0 0
        %601 = vmatpush1.bf16.msra.mxu0 0
        %602 = vmatprep.subr.bf16.mxu0 0
        %603 = vmatpush1.bf16.msra.mxu0 0
        %604 = vmatprep.subr.bf16.mxu0 0
        %605 = vmatpush1.bf16.msra.mxu0 0
        %606 = vmatprep.subr.bf16.mxu0 0
        %607 = vmatpush1.bf16.msra.mxu0 0
        %608 = vmatprep.subr.bf16.mxu0 0
        %609 = vmatpush1.bf16.msra.mxu0 0
        %610 = vmatprep.subr.bf16.mxu0 0
        %611 = vmatpush1.bf16.msra.mxu0 0
        %612 = vmatprep.subr.bf16.mxu0 0
        %613 = vmatpush1.bf16.msra.mxu0 0
        %614 = vmatprep.mubr.bf16.mxu0 0
        %615 = vmatmul.mubr.bf16.gmra.mrb[0].mxu0 %v576
        %v616 = vpop.f32.mrb[0].mxu0
        %v617 = vadd.f32 %v572, %v616
        %v618 = vpop.f32.mrb[0].mxu0
        %v619 = vpop.f32.mrb[0].mxu0
        %v620 = vpop.f32.mrb[0].mxu0
        %621 = vdwg.mxu0
        %v622 = vmax.f32 %v617, 0.0
        %v623 = vld [vmem:[%s6] sm:$0xf]
        %v624 = vld [vmem:[%s6 + $0x4] sm:$0xf]
        %v625 = vld [vmem:[%s6 + $0x8] sm:$0xf]
        %v626 = vld [vmem:[%s6 + $0xc] sm:$0xf]
        %v627 = vpack.c.bf16 %v622, %v622
        %v628 = vld [vmem:[%s7] sm:$0xff]
        %v629 = vld [vmem:[%s7 + $0x8] sm:$0xff]
        %v630 = vld [vmem:[%s7 + $0x10] sm:$0xff]
        %v631 = vld [vmem:[%s7 + $0x18] sm:$0xff]
        %633 = vset.pattern.permute.xlu0 0
        %634 = vperm.xlu0 %633, %v628
        %v635 = vpop.permute.xlu0 %634
        %638 = vset.pattern.permute.xlu0 0
        %639 = vperm.xlu0 %638, %v629
        %v640 = vpop.permute.xlu0 %639
        %643 = vset.pattern.permute.xlu0 0
        %644 = vperm.xlu0 %643, %v630
        %v645 = vpop.permute.xlu0 %644
        %648 = vset.pattern.permute.xlu0 0
        %649 = vperm.xlu0 %648, %v631
        %v650 = vpop.permute.xlu0 %649
        %v656 = vunpack.c.l.b16 %v623
        %v657 = vunpack.c.l.b16 %v624
        %v658 = vunpack.c.l.b16 %v625
        %v659 = vunpack.c.l.b16 %v626
        %v660 = vpack.c.b16 %v657, %v656
        %v661 = vpack.c.b16 %v659, %v658
        %vm662 = vcmask 64512
        %v664 = vsel %vm662, %v660, 0
        %v667 = vsel %vm662, %v661, 0
        %v670 = vsel %vm578, %v627, 0
        %672 = vmatprep.subr.bf16.mxu0 0
        %673 = vmatpush1.bf16.msra.mxu0 %v670
        %674 = vmatprep.subr.bf16.mxu0 0
        %675 = vmatpush1.bf16.msra.mxu0 0
        %676 = vmatprep.subr.bf16.mxu0 0
        %677 = vmatpush1.bf16.msra.mxu0 0
        %678 = vmatprep.subr.bf16.mxu0 0
        %679 = vmatpush1.bf16.msra.mxu0 0
        %680 = vmatprep.subr.bf16.mxu0 0
        %681 = vmatpush1.bf16.msra.mxu0 0
        %682 = vmatprep.subr.bf16.mxu0 0
        %683 = vmatpush1.bf16.msra.mxu0 0
        %684 = vmatprep.subr.bf16.mxu0 0
        %685 = vmatpush1.bf16.msra.mxu0 0
        %686 = vmatprep.subr.bf16.mxu0 0
        %687 = vmatpush1.bf16.msra.mxu0 0
        %688 = vmatprep.subr.bf16.mxu0 0
        %689 = vmatpush1.bf16.msra.mxu0 0
        %690 = vmatprep.subr.bf16.mxu0 0
        %691 = vmatpush1.bf16.msra.mxu0 0
        %692 = vmatprep.subr.bf16.mxu0 0
        %693 = vmatpush1.bf16.msra.mxu0 0
        %694 = vmatprep.subr.bf16.mxu0 0
        %695 = vmatpush1.bf16.msra.mxu0 0
        %696 = vmatprep.subr.bf16.mxu0 0
        %697 = vmatpush1.bf16.msra.mxu0 0
        %698 = vmatprep.subr.bf16.mxu0 0
        %699 = vmatpush1.bf16.msra.mxu0 0
        %700 = vmatprep.subr.bf16.mxu0 0
        %701 = vmatpush1.bf16.msra.mxu0 0
        %702 = vmatprep.subr.bf16.mxu0 0
        %703 = vmatpush1.bf16.msra.mxu0 0
        %704 = vmatprep.mubr.bf16.mxu0 0
        %705 = vmatmul.mubr.bf16.gmra.mrb[0].mxu0 %v664
        %v706 = vpop.f32.mrb[0].mxu0
        %v707 = vadd.f32 %v635, %v706
        %v708 = vpop.f32.mrb[0].mxu0
        %v709 = vpop.f32.mrb[0].mxu0
        %v710 = vadd.f32 %v640, %v709
        %v711 = vpop.f32.mrb[0].mxu0
        %712 = vmatprep.mubr.bf16.mxu0 0
        %713 = vmatmul.mubr.bf16.gmra.mrb[0].mxu0 %v667
        %v714 = vpop.f32.mrb[0].mxu0
        %v715 = vadd.f32 %v645, %v714
        %v716 = vpop.f32.mrb[0].mxu0
        %v717 = vpop.f32.mrb[0].mxu0
        %v718 = vadd.f32 %v650, %v717
        %v719 = vpop.f32.mrb[0].mxu0
        %720 = vdwg.mxu0
        %v721 = vunpack.c.l.bf16 %v410
        %v722 = vunpack.c.l.bf16 %v411
        %v723 = vunpack.c.l.bf16 %v412
        %v724 = vunpack.c.l.bf16 %v413
        %v725 = vadd.f32 %v707, %v721
        %v726 = vadd.f32 %v710, %v722
        %v727 = vadd.f32 %v715, %v723
        %v728 = vadd.f32 %v718, %v724
        %v729 = vmax.f32 %v725, 0.0
        %v730 = vmax.f32 %v726, 0.0
        %v731 = vmax.f32 %v727, 0.0
        %v732 = vmax.f32 %v728, 0.0
        %733 = vst [vmem:[%s399] sm:$0xff] %v729
        %734 = vst [vmem:[%s399 + $0x8] sm:$0xff] %v730
        %735 = vst [vmem:[%s399 + $0x10] sm:$0xff] %v731
        %736 = vst [vmem:[%s399 + $0x18] sm:$0xff] %v732
        %s737 = sand.u32 %s226, 1
        %s738 = scalar_lea.sflag [#allocation4], %s737
        %s739 = sand.u32 %s226, 1
        %s740 = smul.addr %s739, 32
        %s741 = scalar_lea.vmem [#allocation3], %s740
        // Predicated region
        $region94: #{tpu_custom_call.1} parent=88 // pred_check
          %p742 = pneg %p236
        $region95: #{tpu_custom_call.1} parent=88 // pred_check_branch
          %744 = sbr.rel (%p742) target = $region97
        $region96: #{tpu_custom_call.1} parent=88 // pred_region
          %s746 = ssub.s32 512, 512
          %747 = vsyncadd %s738, %s746
          %s748 = smul.addr %s26, 8
          %s749 = sadd.s32 %s27, %s748
          %s750 = smul.addr %s749, 128
          %s751 = scalar_lea.hbm %s8, %s750
          %s752 = sshll.u32 %s741, 4
          %s753 = int_to_ptr.vmem [resolvable:$true] %s752
          %758 = dma.vmem_to_hbm [thread:$0]  %s753, 512, %s751, %s738, 128, 256, 8
        $region97: #{tpu_custom_call.1} parent=88 // pred_fallthru
          _
      $region89: #{tpu_custom_call.1} parent=5 // pred_fallthru
        _
      %p759 = scmp.le.s32.totalorder 2, %s17
      // Predicated region
      $region98: #{tpu_custom_call.1} parent=5 // pred_check
        %p760 = pneg %p759
      $region99: #{tpu_custom_call.1} parent=5 // pred_check_branch
        %762 = sbr.rel (%p760) target = $region101
      $region100: #{tpu_custom_call.1} parent=5 // pred_region
        %s763 = ssub.s32 %s17, 2
        // Predicated region
        $region102: #{tpu_custom_call.1} parent=100 // pred_check
          %p764 = pneg %p242
        $region103: #{tpu_custom_call.1} parent=100 // pred_check_branch
          %766 = sbr.rel (%p764) target = $region105
        $region104: #{tpu_custom_call.1} parent=100 // pred_region
          %s767 = sand.u32 %s227, 1
          %s768 = scalar_lea.sflag [#allocation4], %s767
          %s769 = sand.u32 %s227, 1
          %s770 = smul.addr %s769, 32
          %s771 = scalar_lea.vmem [#allocation3], %s770
          %772 = dma.done %s768, 512
        $region105: #{tpu_custom_call.1} parent=100 // pred_fallthru
          _
      $region101: #{tpu_custom_call.1} parent=5 // pred_fallthru
        _
    $region6: #{tpu_custom_call.1} parent=1 // loop_footer
      %s21 = sadd.s32 1, %s17
    $region7: #{tpu_custom_call.1} parent=1 // loop_footer_branch
      %16 = sbr.rel target = $region3
    $region8: #{tpu_custom_call.1} parent=1 // loop_exit
      _
    %773 = vsyncpa [#allocation4], 1
    %s774 = scalar_lea.sflag [#allocation4], 1
    %775 = vsyncpa %s774, 1

</llo_original>
